<compile_context>
chip_gen: v6e
topology: v6e:2x2x1
jax: 0.10.0
libtpu: 0.0.40
codegen_flags: <defaults>
</compile_context>

<pallas_src>
import functools

import jax
import jax.numpy as jnp
from jax.experimental import pallas as pl
from jax.experimental.pallas import tpu as pltpu


# --------------------------- small helpers ---------------------------------

def _round_up(x, m):
    return (x + m - 1) // m * m


def _sublane_multiple(dtype):
    # Second-minor tiling multiple: 8 for 4-byte, 16 for 2-byte, 32 for 1-byte.
    return 32 // jnp.dtype(dtype).itemsize


def _erf_poly(x):
    # Abramowitz & Stegun 7.1.26 erf approximation, max abs error ~1.5e-7.
    # Uses only VPU/EUP ops so it is guaranteed to lower inside Mosaic.
    a1, a2, a3, a4, a5 = (0.254829592, -0.284496736, 1.421413741,
                          -1.453152027, 1.061405429)
    p = 0.3275911
    z = jnp.abs(x)
    t = 1.0 / (1.0 + p * z)
    poly = ((((a5 * t + a4) * t + a3) * t + a2) * t + a1) * t
    y = 1.0 - poly * jnp.exp(-z * z)
    return jnp.where(x >= 0.0, y, -y)


def _gelu_exact(x):
    # PyTorch nn.GELU() default (erf formulation), in f32.
    return 0.5 * x * (1.0 + _erf_poly(x * 0.7071067811865476))


# ------------------------------- kernel ------------------------------------

def _pgn_adapter_kernel(hs_ref, wd_ref, bd_ref, wu_ref, bu_ref, out_ref):
    # hs_ref: (TM, H) activation tile; wd/bd/wu/bu: generated adapter weights,
    # resident across the whole row grid (constant index_map, single-buffered).
    x = hs_ref[...]
    x32 = x.astype(jnp.float32)

    # down projection: bf16 MXU matmul, f32 accumulation
    d = jnp.dot(x.astype(jnp.bfloat16), wd_ref[...],
                preferred_element_type=jnp.float32)
    d = d + bd_ref[...].astype(jnp.float32)            # (TM, A) + (1, A)
    d = _gelu_exact(d)                                  # exact erf GELU in f32

    # up projection: bf16 MXU matmul, f32 accumulation
    u = jnp.dot(d.astype(jnp.bfloat16), wu_ref[...],
                preferred_element_type=jnp.float32)
    u = u + bu_ref[...].astype(jnp.float32)             # (TM, H) + (1, H)

    # residual in f32, cast back to the output dtype
    out_ref[...] = (x32 + u).astype(out_ref.dtype)


# ------------------------------ wrapper -------------------------------------

_VMEM_SOFT_BUDGET = 28 * 1024 * 1024   # conservative vs v7x's 64 MiB / TensorCore
_VMEM_LIMIT_CAP = 32 * 1024 * 1024


def _tile_footprint_bytes(tile, H, A, act_bytes, out_bytes):
    streamed = 2 * tile * H * (act_bytes + out_bytes)        # double-buffered in/out tiles
    weights = (H * A + A * H) * 2 + (A + H) * 4              # bf16 Ws + f32 biases (1 buffer)
    temps = tile * H * 4 * 2 + tile * A * 4                  # f32 x32, u, d temporaries
    return streamed + weights + temps


def _generate_adapter_weights(lang_emb, params, *, bf16_banks=True):
    """PGN hyper-network: generate this language's adapter weights (once, in XLA)."""
    if bf16_banks:
        le = lang_emb.astype(jnp.bfloat16)
        w_down = jnp.einsum("l,lha->ha", le, params["down_W"].astype(jnp.bfloat16),
                            preferred_element_type=jnp.float32).astype(jnp.bfloat16)
        w_up = jnp.einsum("l,lah->ah", le, params["up_W"].astype(jnp.bfloat16),
                          preferred_element_type=jnp.float32).astype(jnp.bfloat16)
    else:
        w_down = jnp.einsum("l,lha->ha", lang_emb, params["down_W"])
        w_up = jnp.einsum("l,lah->ah", lang_emb, params["up_W"])
    b_down = jnp.einsum("l,la->a", lang_emb, params["down_b"]).astype(jnp.float32)
    b_up = jnp.einsum("l,lh->h", lang_emb, params["up_b"]).astype(jnp.float32)
    return w_down, b_down[None, :], w_up, b_up[None, :]


@functools.partial(jax.jit, static_argnames=("tile_rows",))
def adapter_with_parameter_gen(hidden_states, lang_emb, params, tile_rows=512):
    """hidden_states: (B, S, H); lang_emb: (L,). Returns (B, S, H)."""
    B, S, H = hidden_states.shape
    L, _, A = params["down_W"].shape

    w_down, b_down, w_up, b_up = _generate_adapter_weights(lang_emb, params)

    rows = B * S
    hs2 = hidden_states.reshape(rows, H)

    act_bytes = jnp.dtype(hidden_states.dtype).itemsize
    out_bytes = act_bytes
    sub = _sublane_multiple(hidden_states.dtype)

    # Pick the biggest row tile that fits the VMEM budget; no padding -- the grid
    # uses cdiv and Pallas clips the partial last block on store.
    tile = min(_round_up(tile_rows, sub), _round_up(rows, sub))
    while (tile > sub and
           _tile_footprint_bytes(tile, H, A, act_bytes, out_bytes) > _VMEM_SOFT_BUDGET):
        tile = max(sub, _round_up(tile // 2, sub))
    grid_rows = pl.cdiv(rows, tile)

    footprint = _tile_footprint_bytes(tile, H, A, act_bytes, out_bytes)
    vmem_limit = int(min(_VMEM_LIMIT_CAP, max(16 * 1024 * 1024, 2 * footprint)))

    const = lambda i: (0, 0)  # noqa: E731  (weights resident across the grid)

    out2 = pl.pallas_call(
        _pgn_adapter_kernel,
        out_shape=jax.ShapeDtypeStruct((rows, H), hidden_states.dtype),
        grid_spec=pltpu.PrefetchScalarGridSpec(
            num_scalar_prefetch=0,
            grid=(grid_rows,),
            in_specs=[
                pl.BlockSpec((tile, H), lambda i: (i, 0)),   # activation tile (pipelined)
                pl.BlockSpec((H, A), const, pipeline_mode=pl.Buffered(1)),  # down W (bf16)
                pl.BlockSpec((1, A), const, pipeline_mode=pl.Buffered(1)),  # down b (f32)
                pl.BlockSpec((A, H), const, pipeline_mode=pl.Buffered(1)),  # up W   (bf16)
                pl.BlockSpec((1, H), const, pipeline_mode=pl.Buffered(1)),  # up b   (f32)
            ],
            out_specs=pl.BlockSpec((tile, H), lambda i: (i, 0)),
        ),
        compiler_params=pltpu.CompilerParams(
            dimension_semantics=("parallel",),
            vmem_limit_bytes=vmem_limit,
        ),
    )(hs2, w_down, b_down, w_up, b_up)

    return out2.reshape(B, S, H)


# ----------------------------- references ---------------------------------

def _reference_f32(hidden_states, lang_emb, params):
    """Pure-f32 math matching the PyTorch module (exact erf GELU)."""
    w_down = jnp.einsum("l,lha->ha", lang_emb, params["down_W"])
    b_down = jnp.einsum("l,la->a", lang_emb, params["down_b"])
    w_up = jnp.einsum("l,lah->ah", lang_emb, params["up_W"])
    b_up = jnp.einsum("l,lh->h", lang_emb, params["up_b"])
    d = jax.nn.gelu(hidden_states @ w_down + b_down, approximate=False)
    return hidden_states + (d @ w_up + b_up)


def _reference_bf16(hidden_states, lang_emb, params):
    """Same math but mirroring the kernel's bf16 operands / f32 accumulation."""
    w_down, b_down, w_up, b_up = _generate_adapter_weights(lang_emb, params)
    x = hidden_states.astype(jnp.float32)
    d = jnp.einsum("bsh,ha->bsa", x.astype(jnp.bfloat16), w_down,
                   preferred_element_type=jnp.float32) + b_down[0]
    d = jax.nn.gelu(d, approximate=False)
    u = jnp.einsum("bsa,ah->bsh", d.astype(jnp.bfloat16), w_up,
                   preferred_element_type=jnp.float32) + b_up[0]
    return x + u


def make_params(key, language_emb_size, hidden, adapter):
    ks = jax.random.split(key, 4)
    scale = 0.02  # larger than the module's 1e-4 init so the numeric check is meaningful
    return {
        "down_W": scale * jax.random.normal(ks[0], (language_emb_size, hidden, adapter), jnp.float32),
        "down_b": scale * jax.random.normal(ks[1], (language_emb_size, adapter), jnp.float32),
        "up_W":   scale * jax.random.normal(ks[2], (language_emb_size, adapter, hidden), jnp.float32),
        "up_b":   scale * jax.random.normal(ks[3], (language_emb_size, hidden), jnp.float32),
    }


if __name__ == "__main__":
    B, S = 2, 100          # rows = 200
    HIDDEN = 256           # lane-dense (multiple of 128)
    ADAPTER = 128          # lane-dense (multiple of 128)
    LANG_EMB = 4

    key = jax.random.PRNGKey(0)
    k_hs, k_le, k_p = jax.random.split(key, 3)

    hidden_states = jax.random.normal(k_hs, (B, S, HIDDEN), jnp.float32)
    lang_emb = jax.random.normal(k_le, (LANG_EMB,), jnp.float32)
    params = make_params(k_p, LANG_EMB, HIDDEN, ADAPTER)

    # tile_rows=128 -> grid of 2 with a partial last block (72 valid rows):
    # exercises the pad-free Pallas partial-block clipping path.
    out = adapter_with_parameter_gen(hidden_states, lang_emb, params, tile_rows=128)
    out = jax.block_until_ready(out)
    assert out.shape == (B, S, HIDDEN)

    # Default big-tile path (tile auto-clamped to the row count / VMEM budget).
    out_big = adapter_with_parameter_gen(hidden_states, lang_emb, params)
    out_big = jax.block_until_ready(out_big)
    assert out_big.shape == (B, S, HIDDEN)

    ref_bf16 = _reference_bf16(hidden_states, lang_emb, params)
    ref_f32 = _reference_f32(hidden_states, lang_emb, params)

    # Tight check vs. a reference using the same bf16 operands as the kernel.
    assert jnp.allclose(out, ref_bf16, atol=3e-3, rtol=3e-3), "mismatch vs bf16 reference (tiled)"
    assert jnp.allclose(out_big, ref_bf16, atol=3e-3, rtol=3e-3), "mismatch vs bf16 reference (big tile)"
    # Looser check vs. exact f32 module math (difference = bf16 rounding).
    assert jnp.allclose(out, ref_f32, atol=3e-2, rtol=3e-2), "mismatch vs f32 reference"

    print("KERNEL_OK")
</pallas_src>

<mosaic_0001>
module attributes {stable_mosaic.version = 11 : i64} {
  func.func @_pgn_adapter_kernel(%arg0: i32, %arg1: memref<128x256xf32, #tpu.memory_space<vmem>>, %arg2: memref<256x128xbf16, #tpu.memory_space<vmem>>, %arg3: memref<1x128xf32, #tpu.memory_space<vmem>>, %arg4: memref<128x256xbf16, #tpu.memory_space<vmem>>, %arg5: memref<1x256xf32, #tpu.memory_space<vmem>>, %arg6: memref<128x256xf32, #tpu.memory_space<vmem>>) attributes {dimension_semantics = [#tpu.dimension_semantics<parallel>], iteration_bounds = array<i64: 2>, scalar_prefetch = 0 : i64, scratch_operands = 0 : i64, tpu.core_type = #tpu.core_type<tc>, window_params = [{transform_indices = @transform_0, window_bounds = array<i64: 128, 256>}, {pipeline_mode = #tpu.pipeline_mode<synchronous>, transform_indices = @transform_1, window_bounds = array<i64: 256, 128>}, {pipeline_mode = #tpu.pipeline_mode<synchronous>, transform_indices = @transform_2, window_bounds = array<i64: 1, 128>}, {pipeline_mode = #tpu.pipeline_mode<synchronous>, transform_indices = @transform_3, window_bounds = array<i64: 128, 256>}, {pipeline_mode = #tpu.pipeline_mode<synchronous>, transform_indices = @transform_4, window_bounds = array<i64: 1, 256>}, {transform_indices = @transform_5, window_bounds = array<i64: 128, 256>}]} {
    %c0 = arith.constant 0 : index
    %c0_0 = arith.constant 0 : index
    %0 = vector.load %arg1[%c0, %c0_0] : memref<128x256xf32, #tpu.memory_space<vmem>>, vector<128x256xf32>
    %1 = arith.truncf %0 : vector<128x256xf32> to vector<128x256xbf16>
    %c0_1 = arith.constant 0 : index
    %c0_2 = arith.constant 0 : index
    %2 = vector.load %arg2[%c0_1, %c0_2] : memref<256x128xbf16, #tpu.memory_space<vmem>>, vector<256x128xbf16>
    %cst = arith.constant dense<0.000000e+00> : vector<128x128xf32>
    %3 = tpu.matmul %1, %2, %cst {dimension_numbers = #tpu.dot_dimension_numbers<[1], [0], [0], [1], [0, 0, 1, 1], [], []>} : vector<128x256xbf16>, vector<256x128xbf16>, vector<128x128xf32> -> vector<128x128xf32>
    %c0_3 = arith.constant 0 : index
    %c0_4 = arith.constant 0 : index
    %4 = vector.load %arg3[%c0_3, %c0_4] : memref<1x128xf32, #tpu.memory_space<vmem>>, vector<1x128xf32>
    %5 = vector.broadcast %4 : vector<1x128xf32> to vector<128x128xf32>
    %6 = arith.addf %3, %5 : vector<128x128xf32>
    %cst_5 = arith.constant 5.000000e-01 : f32
    %7 = vector.broadcast %cst_5 : f32 to vector<128x128xf32>
    %8 = arith.mulf %7, %6 : vector<128x128xf32>
    %cst_6 = arith.constant 0.707106769 : f32
    %9 = vector.broadcast %cst_6 : f32 to vector<128x128xf32>
    %10 = arith.mulf %6, %9 : vector<128x128xf32>
    %11 = math.absf %10 : vector<128x128xf32>
    %cst_7 = arith.constant 0.327591091 : f32
    %12 = vector.broadcast %cst_7 : f32 to vector<128x128xf32>
    %13 = arith.mulf %12, %11 : vector<128x128xf32>
    %cst_8 = arith.constant 1.000000e+00 : f32
    %14 = vector.broadcast %cst_8 : f32 to vector<128x128xf32>
    %15 = arith.addf %14, %13 : vector<128x128xf32>
    %cst_9 = arith.constant 1.000000e+00 : f32
    %16 = vector.broadcast %cst_9 : f32 to vector<128x128xf32>
    %17 = arith.divf %16, %15 : vector<128x128xf32>
    %cst_10 = arith.constant 1.06140542 : f32
    %18 = vector.broadcast %cst_10 : f32 to vector<128x128xf32>
    %19 = arith.mulf %18, %17 : vector<128x128xf32>
    %cst_11 = arith.constant -1.45315206 : f32
    %20 = vector.broadcast %cst_11 : f32 to vector<128x128xf32>
    %21 = arith.addf %19, %20 : vector<128x128xf32>
    %22 = arith.mulf %21, %17 : vector<128x128xf32>
    %cst_12 = arith.constant 1.42141378 : f32
    %23 = vector.broadcast %cst_12 : f32 to vector<128x128xf32>
    %24 = arith.addf %22, %23 : vector<128x128xf32>
    %25 = arith.mulf %24, %17 : vector<128x128xf32>
    %cst_13 = arith.constant -0.284496725 : f32
    %26 = vector.broadcast %cst_13 : f32 to vector<128x128xf32>
    %27 = arith.addf %25, %26 : vector<128x128xf32>
    %28 = arith.mulf %27, %17 : vector<128x128xf32>
    %cst_14 = arith.constant 0.254829586 : f32
    %29 = vector.broadcast %cst_14 : f32 to vector<128x128xf32>
    %30 = arith.addf %28, %29 : vector<128x128xf32>
    %31 = arith.mulf %30, %17 : vector<128x128xf32>
    %cst_15 = arith.constant 0.000000e+00 : f32
    %32 = vector.broadcast %cst_15 : f32 to vector<128x128xf32>
    %33 = arith.subf %32, %11 : vector<128x128xf32>
    %34 = arith.mulf %33, %11 : vector<128x128xf32>
    %35 = math.exp %34 : vector<128x128xf32>
    %36 = arith.mulf %31, %35 : vector<128x128xf32>
    %cst_16 = arith.constant 1.000000e+00 : f32
    %37 = vector.broadcast %cst_16 : f32 to vector<128x128xf32>
    %38 = arith.subf %37, %36 : vector<128x128xf32>
    %cst_17 = arith.constant 0.000000e+00 : f32
    %39 = vector.broadcast %cst_17 : f32 to vector<128x128xf32>
    %40 = arith.cmpf oge, %10, %39 : vector<128x128xf32>
    %cst_18 = arith.constant 0.000000e+00 : f32
    %41 = vector.broadcast %cst_18 : f32 to vector<128x128xf32>
    %42 = arith.subf %41, %38 : vector<128x128xf32>
    %43 = arith.select %40, %38, %42 : vector<128x128xi1>, vector<128x128xf32>
    %cst_19 = arith.constant 1.000000e+00 : f32
    %44 = vector.broadcast %cst_19 : f32 to vector<128x128xf32>
    %45 = arith.addf %44, %43 : vector<128x128xf32>
    %46 = arith.mulf %8, %45 : vector<128x128xf32>
    %47 = arith.truncf %46 : vector<128x128xf32> to vector<128x128xbf16>
    %c0_20 = arith.constant 0 : index
    %c0_21 = arith.constant 0 : index
    %48 = vector.load %arg4[%c0_20, %c0_21] : memref<128x256xbf16, #tpu.memory_space<vmem>>, vector<128x256xbf16>
    %cst_22 = arith.constant dense<0.000000e+00> : vector<128x256xf32>
    %49 = tpu.matmul %47, %48, %cst_22 {dimension_numbers = #tpu.dot_dimension_numbers<[1], [0], [0], [1], [0, 0, 1, 1], [], []>} : vector<128x128xbf16>, vector<128x256xbf16>, vector<128x256xf32> -> vector<128x256xf32>
    %c0_23 = arith.constant 0 : index
    %c0_24 = arith.constant 0 : index
    %50 = vector.load %arg5[%c0_23, %c0_24] : memref<1x256xf32, #tpu.memory_space<vmem>>, vector<1x256xf32>
    %51 = vector.broadcast %50 : vector<1x256xf32> to vector<128x256xf32>
    %52 = arith.addf %49, %51 : vector<128x256xf32>
    %53 = arith.addf %0, %52 : vector<128x256xf32>
    %c0_25 = arith.constant 0 : index
    %c0_26 = arith.constant 0 : index
    %54 = vector.load %arg6[%c0_25, %c0_26] : memref<128x256xf32, #tpu.memory_space<vmem>>, vector<128x256xf32>
    tpu.vector_store %arg6[%c0_25, %c0_26], %53 {strides = array<i32>} : memref<128x256xf32, #tpu.memory_space<vmem>>, vector<128x256xf32>,
    return
  }
  func.func @transform_0(%arg0: i32) -> (i32, i32) {
    %c0_i32 = arith.constant 0 : i32
    %c0_i32_0 = arith.constant 0 : i32
    return %arg0, %c0_i32 : i32, i32
  }
  func.func @transform_1(%arg0: i32) -> (i32, i32) {
    %c0_i32 = arith.constant 0 : i32
    %c0_i32_0 = arith.constant 0 : i32
    %c0_i32_1 = arith.constant 0 : i32
    return %c0_i32, %c0_i32_0 : i32, i32
  }
  func.func @transform_2(%arg0: i32) -> (i32, i32) {
    %c0_i32 = arith.constant 0 : i32
    %c0_i32_0 = arith.constant 0 : i32
    %c0_i32_1 = arith.constant 0 : i32
    return %c0_i32, %c0_i32_0 : i32, i32
  }
  func.func @transform_3(%arg0: i32) -> (i32, i32) {
    %c0_i32 = arith.constant 0 : i32
    %c0_i32_0 = arith.constant 0 : i32
    %c0_i32_1 = arith.constant 0 : i32
    return %c0_i32, %c0_i32_0 : i32, i32
  }
  func.func @transform_4(%arg0: i32) -> (i32, i32) {
    %c0_i32 = arith.constant 0 : i32
    %c0_i32_0 = arith.constant 0 : i32
    %c0_i32_1 = arith.constant 0 : i32
    return %c0_i32, %c0_i32_0 : i32, i32
  }
  func.func @transform_5(%arg0: i32) -> (i32, i32) {
    %c0_i32 = arith.constant 0 : i32
    %c0_i32_0 = arith.constant 0 : i32
    return %arg0, %c0_i32 : i32, i32
  }
}

</mosaic_0001>

<llo_original>
// kernel: adapter_with_parameter_gen.1
$region0: #{adapter_with_parameter_gen.1}
  #allocation0 [shape = 'u32[]', space=smem, size = 0x4, offset = 0x4, fixed_abs, tag = 'smem constant byte address 0x4 - core index']
  #allocation1 [shape = 'u32[144,128]{1,0:T(1,128)}', space=vmem, size = 0x12000, scoped, tag = 'internal scratch']
  %s0 = inlined_call_operand.vmem [shape: f32[200,256], index: 0, kind: input, shape index: {}]
  %s1 = inlined_call_operand.vmem [shape: bf16[256,128], index: 1, kind: input, shape index: {}]
  %s2 = inlined_call_operand.vmem [shape: f32[1,128], index: 2, kind: input, shape index: {}]
  %s3 = inlined_call_operand.vmem [shape: bf16[128,256], index: 3, kind: input, shape index: {}]
  %s4 = inlined_call_operand.vmem [shape: f32[1,256], index: 4, kind: input, shape index: {}]
  %s5 = inlined_call_operand.vmem [shape: f32[200,256], index: 5, kind: output, shape index: {}]
  %s6 = sld [smem:[#allocation0]]
  $region79: #{adapter_with_parameter_gen.1} parent=0
    _
  %s8 = ssub.s32 1, %s6
  %s9 = scalar_select 0, %s8, %s6
  $region1: #{adapter_with_parameter_gen.1} parent=0
    #allocation2 [shape = 'u8[262144]{0}', space=vmem, size = 0x40000, scoped, tag = 'output window, operand 0']
    loop: start=0, step=1, limit=4
    $region2: #{adapter_with_parameter_gen.1} parent=1 // loop_pre_header
      _
    $region3: #{adapter_with_parameter_gen.1} parent=1 // loop_header
      %s11 = sphi 0, %s15
      %p12 = scmp.ge.s32.totalorder %s11, 4
      %s21 = sphi 0, %s23
      %s24 = sphi 0, %s21
      %s25 = sphi 0, %s24
      %s41 = sphi 0, %s25
      %s45 = sphi 0, %s45
      %s47 = sphi 0, %s45
      %s48 = sphi 0, %s47
      %s62 = sphi 0, %s48
      %s66 = sphi 0, %s66
      %s68 = sphi 0, %s66
      %s69 = sphi 0, %s68
      %s83 = sphi 0, %s69
      %s87 = sphi 0, %s87
      %s89 = sphi 0, %s87
      %s90 = sphi 0, %s89
      %s104 = sphi 0, %s90
      %s108 = sphi 0, %s108
      %s110 = sphi 0, %s108
      %s111 = sphi 0, %s110
      %s125 = sphi 0, %s111
      %s131 = sphi 0, %s133
      %s134 = sphi 0, %s131
      %s135 = sphi 0, %s134
      %s151 = sphi 0, %s135
    $region4: #{adapter_with_parameter_gen.1} parent=1 // loop_header_branch
      %14 = sbr.rel (%p12) target = $region8
    $region5: #{adapter_with_parameter_gen.1} parent=1 // loop_body
      %s16 = ssub.s32 %s11, 1
      %s17 = ssub.s32 %s11, 2
      %s18 = sadd.s32 %s11, 1
      %s19 = ssub.s32 %s11, %s18
      %p20 = scmp.eq.s32.totalorder %s19, 0
      %s22 = sadd.s32 %s21, 1
      %s23 = scalar_select %p20, %s21, %s22
      %p26 = pneg %p20
      %p27 = scmp.eq.s32.totalorder %s11, 1
      %p28 = por %p26, %p27
      %p29 = scmp.ne.s32.totalorder %s21, %s24
      %p30 = scmp.eq.s32.totalorder %s11, 0
      %p31 = por %p29, %p30
      %p32 = scmp.ne.s32.totalorder %s21, %s24
      %p33 = scmp.eq.s32.totalorder %s16, 1
      %p34 = por %p32, %p33
      %p35 = scmp.ne.s32.totalorder %s24, %s25
      %p36 = scmp.eq.s32.totalorder %s16, 0
      %p37 = por %p35, %p36
      %p38 = scmp.ne.s32.totalorder %s24, %s25
      %p39 = scmp.eq.s32.totalorder %s17, 1
      %p40 = por %p38, %p39
      %p42 = scmp.ne.s32.totalorder %s25, %s41
      %p43 = scmp.eq.s32.totalorder %s17, 0
      %p44 = por %p42, %p43
      %s46 = sadd.s32 %s45, 1
      %p49 = scmp.eq.s32.totalorder %s11, 1
      %p50 = scmp.ne.s32.totalorder %s45, %s47
      %p51 = scmp.eq.s32.totalorder %s11, 0
      %p52 = por %p50, %p51
      %p53 = scmp.ne.s32.totalorder %s45, %s47
      %p54 = scmp.eq.s32.totalorder %s16, 1
      %p55 = por %p53, %p54
      %p56 = scmp.ne.s32.totalorder %s47, %s48
      %p57 = scmp.eq.s32.totalorder %s16, 0
      %p58 = por %p56, %p57
      %p59 = scmp.ne.s32.totalorder %s47, %s48
      %p60 = scmp.eq.s32.totalorder %s17, 1
      %p61 = por %p59, %p60
      %p63 = scmp.ne.s32.totalorder %s48, %s62
      %p64 = scmp.eq.s32.totalorder %s17, 0
      %p65 = por %p63, %p64
      %s67 = sadd.s32 %s66, 1
      %p70 = scmp.eq.s32.totalorder %s11, 1
      %p71 = scmp.ne.s32.totalorder %s66, %s68
      %p72 = scmp.eq.s32.totalorder %s11, 0
      %p73 = por %p71, %p72
      %p74 = scmp.ne.s32.totalorder %s66, %s68
      %p75 = scmp.eq.s32.totalorder %s16, 1
      %p76 = por %p74, %p75
      %p77 = scmp.ne.s32.totalorder %s68, %s69
      %p78 = scmp.eq.s32.totalorder %s16, 0
      %p79 = por %p77, %p78
      %p80 = scmp.ne.s32.totalorder %s68, %s69
      %p81 = scmp.eq.s32.totalorder %s17, 1
      %p82 = por %p80, %p81
      %p84 = scmp.ne.s32.totalorder %s69, %s83
      %p85 = scmp.eq.s32.totalorder %s17, 0
      %p86 = por %p84, %p85
      %s88 = sadd.s32 %s87, 1
      %p91 = scmp.eq.s32.totalorder %s11, 1
      %p92 = scmp.ne.s32.totalorder %s87, %s89
      %p93 = scmp.eq.s32.totalorder %s11, 0
      %p94 = por %p92, %p93
      %p95 = scmp.ne.s32.totalorder %s87, %s89
      %p96 = scmp.eq.s32.totalorder %s16, 1
      %p97 = por %p95, %p96
      %p98 = scmp.ne.s32.totalorder %s89, %s90
      %p99 = scmp.eq.s32.totalorder %s16, 0
      %p100 = por %p98, %p99
      %p101 = scmp.ne.s32.totalorder %s89, %s90
      %p102 = scmp.eq.s32.totalorder %s17, 1
      %p103 = por %p101, %p102
      %p105 = scmp.ne.s32.totalorder %s90, %s104
      %p106 = scmp.eq.s32.totalorder %s17, 0
      %p107 = por %p105, %p106
      %s109 = sadd.s32 %s108, 1
      %p112 = scmp.eq.s32.totalorder %s11, 1
      %p113 = scmp.ne.s32.totalorder %s108, %s110
      %p114 = scmp.eq.s32.totalorder %s11, 0
      %p115 = por %p113, %p114
      %p116 = scmp.ne.s32.totalorder %s108, %s110
      %p117 = scmp.eq.s32.totalorder %s16, 1
      %p118 = por %p116, %p117
      %p119 = scmp.ne.s32.totalorder %s110, %s111
      %p120 = scmp.eq.s32.totalorder %s16, 0
      %p121 = por %p119, %p120
      %p122 = scmp.ne.s32.totalorder %s110, %s111
      %p123 = scmp.eq.s32.totalorder %s17, 1
      %p124 = por %p122, %p123
      %p126 = scmp.ne.s32.totalorder %s111, %s125
      %p127 = scmp.eq.s32.totalorder %s17, 0
      %p128 = por %p126, %p127
      %s129 = ssub.s32 %s11, %s18
      %p130 = scmp.eq.s32.totalorder %s129, 0
      %s132 = sadd.s32 %s131, 1
      %s133 = scalar_select %p130, %s131, %s132
      %p136 = pneg %p130
      %p137 = scmp.eq.s32.totalorder %s11, 1
      %p138 = por %p136, %p137
      %p139 = scmp.ne.s32.totalorder %s131, %s134
      %p140 = scmp.eq.s32.totalorder %s11, 0
      %p141 = por %p139, %p140
      %p142 = scmp.ne.s32.totalorder %s131, %s134
      %p143 = scmp.eq.s32.totalorder %s16, 1
      %p144 = por %p142, %p143
      %p145 = scmp.ne.s32.totalorder %s134, %s135
      %p146 = scmp.eq.s32.totalorder %s16, 0
      %p147 = por %p145, %p146
      %p148 = scmp.ne.s32.totalorder %s134, %s135
      %p149 = scmp.eq.s32.totalorder %s17, 1
      %p150 = por %p148, %p149
      %p152 = scmp.ne.s32.totalorder %s135, %s151
      %p153 = scmp.eq.s32.totalorder %s17, 0
      %p154 = por %p152, %p153
      %p155 = scmp.le.s32.totalorder 1, %s11
      %p156 = scmp.lt.s32.totalorder %s11, 3
      %p157 = pnand %p155, %p156
      %p158 = pneg %p157
      // Predicated region
      $region9: #{adapter_with_parameter_gen.1} parent=5 // pred_check
        _
      $region10: #{adapter_with_parameter_gen.1} parent=5 // pred_check_branch
        %160 = sbr.rel (%p157) target = $region12
      $region11: #{adapter_with_parameter_gen.1} parent=5 // pred_region
        %s161 = ssub.s32 %s11, 1
        // Predicated region
        $region13: #{adapter_with_parameter_gen.1} parent=11 // pred_check
          %p162 = pneg %p58
        $region14: #{adapter_with_parameter_gen.1} parent=11 // pred_check_branch
          %164 = sbr.rel (%p162) target = $region16
        $region15: #{adapter_with_parameter_gen.1} parent=11 // pred_region
          _
        $region16: #{adapter_with_parameter_gen.1} parent=11 // pred_fallthru
          _
        // Predicated region
        $region17: #{adapter_with_parameter_gen.1} parent=11 // pred_check
          %p165 = pneg %p79
        $region18: #{adapter_with_parameter_gen.1} parent=11 // pred_check_branch
          %167 = sbr.rel (%p165) target = $region20
        $region19: #{adapter_with_parameter_gen.1} parent=11 // pred_region
          _
        $region20: #{adapter_with_parameter_gen.1} parent=11 // pred_fallthru
          _
        // Predicated region
        $region21: #{adapter_with_parameter_gen.1} parent=11 // pred_check
          %p168 = pneg %p100
        $region22: #{adapter_with_parameter_gen.1} parent=11 // pred_check_branch
          %170 = sbr.rel (%p168) target = $region24
        $region23: #{adapter_with_parameter_gen.1} parent=11 // pred_region
          _
        $region24: #{adapter_with_parameter_gen.1} parent=11 // pred_fallthru
          _
        // Predicated region
        $region25: #{adapter_with_parameter_gen.1} parent=11 // pred_check
          %p171 = pneg %p121
        $region26: #{adapter_with_parameter_gen.1} parent=11 // pred_check_branch
          %173 = sbr.rel (%p171) target = $region28
        $region27: #{adapter_with_parameter_gen.1} parent=11 // pred_region
          _
        $region28: #{adapter_with_parameter_gen.1} parent=11 // pred_fallthru
          _
      $region12: #{adapter_with_parameter_gen.1} parent=5 // pred_fallthru
        _
      %p174 = scmp.lt.s32.totalorder %s11, 2
      // Predicated region
      $region29: #{adapter_with_parameter_gen.1} parent=5 // pred_check
        %p175 = pneg %p174
      $region30: #{adapter_with_parameter_gen.1} parent=5 // pred_check_branch
        %177 = sbr.rel (%p175) target = $region32
      $region31: #{adapter_with_parameter_gen.1} parent=5 // pred_region
        // Predicated region
        $region33: #{adapter_with_parameter_gen.1} parent=31 // pred_check
          %p178 = pneg %p31
        $region34: #{adapter_with_parameter_gen.1} parent=31 // pred_check_branch
          %180 = sbr.rel (%p178) target = $region36
        $region35: #{adapter_with_parameter_gen.1} parent=31 // pred_region
          %s181 = smul.u32 16, %s11
          %s182 = ssub.s32 25, %s181
          %p183 = scmp.lt.s32.totalorder %s182, 16
          %s184 = scalar_select %p183, %s182, 16
          %s185 = smul.u32 128, %s184
          %s186 = smul.u32 %s185, 2
          %p187 = scmp.lt.s32.totalorder %s181, 24
          %s188 = scalar_select %p187, %s181, 24
          %s189 = smul.addr %s188, 2
          %s190 = smul.addr %s189, 8
          %s191 = scalar_lea.vmem %s0, %s190
          %s192 = smul.u32 16, %s11
          %s193 = ssub.s32 25, %s192
          %p194 = scmp.lt.s32.totalorder %s193, 16
          %s195 = scalar_select %p194, %s193, 16
          %s196 = smul.u32 128, %s195
          %s197 = smul.u32 %s196, 2
        $region36: #{adapter_with_parameter_gen.1} parent=31 // pred_fallthru
          _
      $region32: #{adapter_with_parameter_gen.1} parent=5 // pred_fallthru
        _
      %p198 = scmp.le.s32.totalorder 1, %s11
      %p199 = scmp.lt.s32.totalorder %s11, 3
      %p200 = pnand %p198, %p199
      %p201 = pneg %p200
      // Predicated region
      $region37: #{adapter_with_parameter_gen.1} parent=5 // pred_check
        _
      $region38: #{adapter_with_parameter_gen.1} parent=5 // pred_check_branch
        %203 = sbr.rel (%p200) target = $region40
      $region39: #{adapter_with_parameter_gen.1} parent=5 // pred_region
        %s204 = ssub.s32 %s11, 1
        %s205 = smul.u32 16, %s16
        %s206 = ssub.s32 25, %s205
        %p207 = scmp.lt.s32.totalorder %s206, 16
        %s208 = scalar_select %p207, %s206, 16
        %s209 = smul.u32 128, %s208
        %s210 = smul.u32 %s209, 2
        %p211 = scmp.lt.s32.totalorder %s205, 24
        %s212 = scalar_select %p211, %s205, 24
        %s213 = smul.addr %s212, 2
        %s214 = smul.addr %s213, 8
        %s215 = scalar_lea.vmem %s0, %s214
        %p216 = pneg %p37
        %p217 = pneg %p34
        %p218 = pneg %p58
        %p219 = pneg %p55
        %p220 = pneg %p79
        %p221 = pneg %p76
        %p222 = pneg %p100
        %p223 = pneg %p97
        %p224 = pneg %p121
        %p225 = pneg %p118
        %p226 = pneg %p147
        %p227 = pneg %p144
        %s228 = sand.u32 %s134, 1
        %s229 = sand.u32 %s134, 1
        %s230 = smul.addr %s229, 256
        %s231 = scalar_lea.vmem [#allocation2], %s230
        %s232 = smul.u32 16, %s16
        %s233 = ssub.s32 25, %s232
        %p234 = scmp.lt.s32.totalorder %s233, 16
        %s235 = scalar_select %p234, %s233, 16
        %s236 = smul.u32 128, %s235
        %s237 = smul.u32 %s236, 2
        %p238 = scmp.lt.s32.totalorder %s232, 24
        %s239 = scalar_select %p238, %s232, 24
        %s240 = smul.addr %s239, 2
        %s241 = smul.addr %s240, 8
        %s242 = scalar_lea.vmem %s0, %s241
        %s243 = smul.u32 16, %s16
        %s244 = ssub.s32 25, %s243
        %p245 = scmp.lt.s32.totalorder %s244, 16
        %s246 = scalar_select %p245, %s244, 16
        %s247 = smul.u32 128, %s246
        %s248 = smul.u32 %s247, 2
        %s249 = smul.u32 16, %s16
        %s250 = ssub.s32 25, %s249
        %p251 = scmp.lt.s32.totalorder %s250, 16
        %s252 = scalar_select %p251, %s250, 16
        %s253 = smul.u32 128, %s252
        %s254 = smul.u32 %s253, 2
        %v256 = vld [vmem:[%s242] sm:$0xff]
        %v257 = vld [vmem:[%s242 + $0x8] sm:$0xff]
        %v258 = vld [vmem:[%s242 + $0x10] sm:$0xff]
        %v259 = vld [vmem:[%s242 + $0x18] sm:$0xff]
        %v260 = vld [vmem:[%s242 + $0x20] sm:$0xff]
        %v261 = vld [vmem:[%s242 + $0x28] sm:$0xff]
        %v262 = vld [vmem:[%s242 + $0x30] sm:$0xff]
        %v263 = vld [vmem:[%s242 + $0x38] sm:$0xff]
        %v264 = vld [vmem:[%s242 + $0x40] sm:$0xff]
        %v265 = vld [vmem:[%s242 + $0x48] sm:$0xff]
        %v266 = vld [vmem:[%s242 + $0x50] sm:$0xff]
        %v267 = vld [vmem:[%s242 + $0x58] sm:$0xff]
        %v268 = vld [vmem:[%s242 + $0x60] sm:$0xff]
        %v269 = vld [vmem:[%s242 + $0x68] sm:$0xff]
        %v270 = vld [vmem:[%s242 + $0x70] sm:$0xff]
        %v271 = vld [vmem:[%s242 + $0x78] sm:$0xff]
        %v272 = vld [vmem:[%s242 + $0x80] sm:$0xff]
        %v273 = vld [vmem:[%s242 + $0x88] sm:$0xff]
        %v274 = vld [vmem:[%s242 + $0x90] sm:$0xff]
        %v275 = vld [vmem:[%s242 + $0x98] sm:$0xff]
        %v276 = vld [vmem:[%s242 + $0xa0] sm:$0xff]
        %v277 = vld [vmem:[%s242 + $0xa8] sm:$0xff]
        %v278 = vld [vmem:[%s242 + $0xb0] sm:$0xff]
        %v279 = vld [vmem:[%s242 + $0xb8] sm:$0xff]
        %v280 = vld [vmem:[%s242 + $0xc0] sm:$0xff]
        %v281 = vld [vmem:[%s242 + $0xc8] sm:$0xff]
        %v282 = vld [vmem:[%s242 + $0xd0] sm:$0xff]
        %v283 = vld [vmem:[%s242 + $0xd8] sm:$0xff]
        %v284 = vld [vmem:[%s242 + $0xe0] sm:$0xff]
        %v285 = vld [vmem:[%s242 + $0xe8] sm:$0xff]
        %v286 = vld [vmem:[%s242 + $0xf0] sm:$0xff]
        %v287 = vld [vmem:[%s242 + $0xf8] sm:$0xff]
        %v288 = vpack.c.bf16 %v258, %v256
        %v289 = vpack.c.bf16 %v259, %v257
        %v290 = vpack.c.bf16 %v262, %v260
        %v291 = vpack.c.bf16 %v263, %v261
        %v292 = vpack.c.bf16 %v266, %v264
        %v293 = vpack.c.bf16 %v267, %v265
        %v294 = vpack.c.bf16 %v270, %v268
        %v295 = vpack.c.bf16 %v271, %v269
        %v296 = vpack.c.bf16 %v274, %v272
        %v297 = vpack.c.bf16 %v275, %v273
        %v298 = vpack.c.bf16 %v278, %v276
        %v299 = vpack.c.bf16 %v279, %v277
        %v300 = vpack.c.bf16 %v282, %v280
        %v301 = vpack.c.bf16 %v283, %v281
        %v302 = vpack.c.bf16 %v286, %v284
        %v303 = vpack.c.bf16 %v287, %v285
        %v304 = vld [vmem:[%s1] sm:$0xf]
        %v305 = vld [vmem:[%s1 + $0x4] sm:$0xf]
        %v306 = vld [vmem:[%s1 + $0x8] sm:$0xf]
        %v307 = vld [vmem:[%s1 + $0xc] sm:$0xf]
        %v308 = vld [vmem:[%s1 + $0x10] sm:$0xf]
        %v309 = vld [vmem:[%s1 + $0x14] sm:$0xf]
        %v310 = vld [vmem:[%s1 + $0x18] sm:$0xf]
        %v311 = vld [vmem:[%s1 + $0x1c] sm:$0xf]
        %v312 = vld [vmem:[%s1 + $0x20] sm:$0xf]
        %v313 = vld [vmem:[%s1 + $0x24] sm:$0xf]
        %v314 = vld [vmem:[%s1 + $0x28] sm:$0xf]
        %v315 = vld [vmem:[%s1 + $0x2c] sm:$0xf]
        %v316 = vld [vmem:[%s1 + $0x30] sm:$0xf]
        %v317 = vld [vmem:[%s1 + $0x34] sm:$0xf]
        %v318 = vld [vmem:[%s1 + $0x38] sm:$0xf]
        %v319 = vld [vmem:[%s1 + $0x3c] sm:$0xf]
        %v320 = vld [vmem:[%s1 + $0x40] sm:$0xf]
        %v321 = vld [vmem:[%s1 + $0x44] sm:$0xf]
        %v322 = vld [vmem:[%s1 + $0x48] sm:$0xf]
        %v323 = vld [vmem:[%s1 + $0x4c] sm:$0xf]
        %v324 = vld [vmem:[%s1 + $0x50] sm:$0xf]
        %v325 = vld [vmem:[%s1 + $0x54] sm:$0xf]
        %v326 = vld [vmem:[%s1 + $0x58] sm:$0xf]
        %v327 = vld [vmem:[%s1 + $0x5c] sm:$0xf]
        %v328 = vld [vmem:[%s1 + $0x60] sm:$0xf]
        %v329 = vld [vmem:[%s1 + $0x64] sm:$0xf]
        %v330 = vld [vmem:[%s1 + $0x68] sm:$0xf]
        %v331 = vld [vmem:[%s1 + $0x6c] sm:$0xf]
        %v332 = vld [vmem:[%s1 + $0x70] sm:$0xf]
        %v333 = vld [vmem:[%s1 + $0x74] sm:$0xf]
        %v334 = vld [vmem:[%s1 + $0x78] sm:$0xf]
        %v335 = vld [vmem:[%s1 + $0x7c] sm:$0xf]
        %v336 = vld [vmem:[%s2] sm:$0x1]
        %v338 = vlaneseq
        %v339 = vshrl.u32 %v338, 7
        %v340 = vsub.s32 0, %v339
        %v341 = vrot.slane %v336, %v340
        %v375 = vunpack.c.l.b16 %v304
        %v376 = vunpack.c.l.b16 %v305
        %v377 = vunpack.c.l.b16 %v306
        %v378 = vunpack.c.l.b16 %v307
        %v379 = vunpack.c.l.b16 %v308
        %v380 = vunpack.c.l.b16 %v309
        %v381 = vunpack.c.l.b16 %v310
        %v382 = vunpack.c.l.b16 %v311
        %v383 = vunpack.c.l.b16 %v312
        %v384 = vunpack.c.l.b16 %v313
        %v385 = vunpack.c.l.b16 %v314
        %v386 = vunpack.c.l.b16 %v315
        %v387 = vunpack.c.l.b16 %v316
        %v388 = vunpack.c.l.b16 %v317
        %v389 = vunpack.c.l.b16 %v318
        %v390 = vunpack.c.l.b16 %v319
        %v391 = vunpack.c.l.b16 %v320
        %v392 = vunpack.c.l.b16 %v321
        %v393 = vunpack.c.l.b16 %v322
        %v394 = vunpack.c.l.b16 %v323
        %v395 = vunpack.c.l.b16 %v324
        %v396 = vunpack.c.l.b16 %v325
        %v397 = vunpack.c.l.b16 %v326
        %v398 = vunpack.c.l.b16 %v327
        %v399 = vunpack.c.l.b16 %v328
        %v400 = vunpack.c.l.b16 %v329
        %v401 = vunpack.c.l.b16 %v330
        %v402 = vunpack.c.l.b16 %v331
        %v403 = vunpack.c.l.b16 %v332
        %v404 = vunpack.c.l.b16 %v333
        %v405 = vunpack.c.l.b16 %v334
        %v406 = vunpack.c.l.b16 %v335
        %v407 = vpack.c.b16 %v376, %v375
        %v408 = vpack.c.b16 %v378, %v377
        %v409 = vpack.c.b16 %v380, %v379
        %v410 = vpack.c.b16 %v382, %v381
        %v411 = vpack.c.b16 %v384, %v383
        %v412 = vpack.c.b16 %v386, %v385
        %v413 = vpack.c.b16 %v388, %v387
        %v414 = vpack.c.b16 %v390, %v389
        %v415 = vpack.c.b16 %v392, %v391
        %v416 = vpack.c.b16 %v394, %v393
        %v417 = vpack.c.b16 %v396, %v395
        %v418 = vpack.c.b16 %v398, %v397
        %v419 = vpack.c.b16 %v400, %v399
        %v420 = vpack.c.b16 %v402, %v401
        %v421 = vpack.c.b16 %v404, %v403
        %v422 = vpack.c.b16 %v406, %v405
        %439 = vmatprep.subr.bf16.mxu0 0
        %440 = vmatpush1.bf16.msra.mxu0 %v414
        %441 = vmatprep.subr.bf16.mxu0 0
        %442 = vmatpush1.bf16.msra.mxu0 %v413
        %443 = vmatprep.subr.bf16.mxu0 0
        %444 = vmatpush1.bf16.msra.mxu0 %v412
        %445 = vmatprep.subr.bf16.mxu0 0
        %446 = vmatpush1.bf16.msra.mxu0 %v411
        %447 = vmatprep.subr.bf16.mxu0 0
        %448 = vmatpush1.bf16.msra.mxu0 %v410
        %449 = vmatprep.subr.bf16.mxu0 0
        %450 = vmatpush1.bf16.msra.mxu0 %v409
        %451 = vmatprep.subr.bf16.mxu0 0
        %452 = vmatpush1.bf16.msra.mxu0 %v408
        %453 = vmatprep.subr.bf16.mxu0 0
        %454 = vmatpush1.bf16.msra.mxu0 %v407
        %455 = vmatprep.subr.bf16.mxu0 0
        %456 = vmatpush2.bf16.msra.mxu0 %v422
        %457 = vmatprep.subr.bf16.mxu0 0
        %458 = vmatpush2.bf16.msra.mxu0 %v421
        %459 = vmatprep.subr.bf16.mxu0 0
        %460 = vmatpush2.bf16.msra.mxu0 %v420
        %461 = vmatprep.subr.bf16.mxu0 0
        %462 = vmatpush2.bf16.msra.mxu0 %v419
        %463 = vmatprep.subr.bf16.mxu0 0
        %464 = vmatpush2.bf16.msra.mxu0 %v418
        %465 = vmatprep.subr.bf16.mxu0 0
        %466 = vmatpush2.bf16.msra.mxu0 %v417
        %467 = vmatprep.subr.bf16.mxu0 0
        %468 = vmatpush2.bf16.msra.mxu0 %v416
        %469 = vmatprep.subr.bf16.mxu0 0
        %470 = vmatpush2.bf16.msra.mxu0 %v415
        %471 = vmatprep.mubr.bf16.mxu0 %v289
        %472 = vmatmul.mubr.bf16.gmra.mxu0 %v288
        %v473 = vpop.f32.mrf.mxu0
        %v474 = vadd.f32 %v341, %v473
        %v475 = vpop.f32.mrf.mxu0
        %v476 = vpop.f32.mrf.mxu0
        %v477 = vadd.f32 %v341, %v476
        %v478 = vpop.f32.mrf.mxu0
        %479 = vmatprep.mubr.bf16.mxu0 %v291
        %480 = vmatmul.mubr.bf16.gmra.mxu0 %v290
        %v481 = vpop.f32.mrf.mxu0
        %v482 = vadd.f32 %v341, %v481
        %v483 = vpop.f32.mrf.mxu0
        %v484 = vpop.f32.mrf.mxu0
        %v485 = vadd.f32 %v341, %v484
        %v486 = vpop.f32.mrf.mxu0
        %487 = vmatprep.mubr.bf16.mxu0 %v293
        %488 = vmatmul.mubr.bf16.gmra.mxu0 %v292
        %v489 = vpop.f32.mrf.mxu0
        %v490 = vadd.f32 %v341, %v489
        %v491 = vpop.f32.mrf.mxu0
        %v492 = vpop.f32.mrf.mxu0
        %v493 = vadd.f32 %v341, %v492
        %v494 = vpop.f32.mrf.mxu0
        %495 = vmatprep.mubr.bf16.mxu0 %v295
        %496 = vmatmul.mubr.bf16.gmra.mxu0 %v294
        %v497 = vpop.f32.mrf.mxu0
        %v498 = vadd.f32 %v341, %v497
        %v499 = vpop.f32.mrf.mxu0
        %v500 = vpop.f32.mrf.mxu0
        %v501 = vadd.f32 %v341, %v500
        %v502 = vpop.f32.mrf.mxu0
        %503 = vmatprep.mubr.bf16.mxu0 %v297
        %504 = vmatmul.mubr.bf16.gmra.mxu0 %v296
        %v505 = vpop.f32.mrf.mxu0
        %v506 = vadd.f32 %v341, %v505
        %v507 = vpop.f32.mrf.mxu0
        %v508 = vpop.f32.mrf.mxu0
        %v509 = vadd.f32 %v341, %v508
        %v510 = vpop.f32.mrf.mxu0
        %511 = vmatprep.mubr.bf16.mxu0 %v299
        %512 = vmatmul.mubr.bf16.gmra.mxu0 %v298
        %v513 = vpop.f32.mrf.mxu0
        %v514 = vadd.f32 %v341, %v513
        %v515 = vpop.f32.mrf.mxu0
        %v516 = vpop.f32.mrf.mxu0
        %v517 = vadd.f32 %v341, %v516
        %v518 = vpop.f32.mrf.mxu0
        %519 = vmatprep.mubr.bf16.mxu0 %v301
        %520 = vmatmul.mubr.bf16.gmra.mxu0 %v300
        %v521 = vpop.f32.mrf.mxu0
        %v522 = vadd.f32 %v341, %v521
        %v523 = vpop.f32.mrf.mxu0
        %v524 = vpop.f32.mrf.mxu0
        %v525 = vadd.f32 %v341, %v524
        %v526 = vpop.f32.mrf.mxu0
        %527 = vmatprep.mubr.bf16.mxu0 %v303
        %528 = vmatmul.mubr.bf16.gmra.mxu0 %v302
        %v529 = vpop.f32.mrf.mxu0
        %v530 = vadd.f32 %v341, %v529
        %v531 = vpop.f32.mrf.mxu0
        %v532 = vpop.f32.mrf.mxu0
        %v533 = vadd.f32 %v341, %v532
        %v534 = vpop.f32.mrf.mxu0
        %535 = vdwg.mxu0
        %v536 = vmul.f32 %v474, 0.5
        %v537 = vmul.f32 %v477, 0.5
        %v538 = vmul.f32 %v482, 0.5
        %v539 = vmul.f32 %v485, 0.5
        %v540 = vmul.f32 %v490, 0.5
        %v541 = vmul.f32 %v493, 0.5
        %v542 = vmul.f32 %v498, 0.5
        %v543 = vmul.f32 %v501, 0.5
        %v544 = vmul.f32 %v506, 0.5
        %v545 = vmul.f32 %v509, 0.5
        %v546 = vmul.f32 %v514, 0.5
        %v547 = vmul.f32 %v517, 0.5
        %v548 = vmul.f32 %v522, 0.5
        %v549 = vmul.f32 %v525, 0.5
        %v550 = vmul.f32 %v530, 0.5
        %v551 = vmul.f32 %v533, 0.5
        %v552 = vmul.f32 %v474, 0.70710677
        %v553 = vmul.f32 %v477, 0.70710677
        %v554 = vmul.f32 %v482, 0.70710677
        %v555 = vmul.f32 %v485, 0.70710677
        %v556 = vmul.f32 %v490, 0.70710677
        %v557 = vmul.f32 %v493, 0.70710677
        %v558 = vmul.f32 %v498, 0.70710677
        %v559 = vmul.f32 %v501, 0.70710677
        %v560 = vmul.f32 %v506, 0.70710677
        %v561 = vmul.f32 %v509, 0.70710677
        %v562 = vmul.f32 %v514, 0.70710677
        %v563 = vmul.f32 %v517, 0.70710677
        %v564 = vmul.f32 %v522, 0.70710677
        %v565 = vmul.f32 %v525, 0.70710677
        %v566 = vmul.f32 %v530, 0.70710677
        %v567 = vmul.f32 %v533, 0.70710677
        %v568 = vand.u32 2147483647, %v552
        %v569 = vand.u32 2147483647, %v553
        %v570 = vand.u32 2147483647, %v554
        %v571 = vand.u32 2147483647, %v555
        %v572 = vand.u32 2147483647, %v556
        %v573 = vand.u32 2147483647, %v557
        %v574 = vand.u32 2147483647, %v558
        %v575 = vand.u32 2147483647, %v559
        %v576 = vand.u32 2147483647, %v560
        %v577 = vand.u32 2147483647, %v561
        %v578 = vand.u32 2147483647, %v562
        %v579 = vand.u32 2147483647, %v563
        %v580 = vand.u32 2147483647, %v564
        %v581 = vand.u32 2147483647, %v565
        %v582 = vand.u32 2147483647, %v566
        %v583 = vand.u32 2147483647, %v567
        %v584 = vmul.f32 %v568, 0.3275911
        %v585 = vmul.f32 %v569, 0.3275911
        %v586 = vmul.f32 %v570, 0.3275911
        %v587 = vmul.f32 %v571, 0.3275911
        %v588 = vmul.f32 %v572, 0.3275911
        %v589 = vmul.f32 %v573, 0.3275911
        %v590 = vmul.f32 %v574, 0.3275911
        %v591 = vmul.f32 %v575, 0.3275911
        %v592 = vmul.f32 %v576, 0.3275911
        %v593 = vmul.f32 %v577, 0.3275911
        %v594 = vmul.f32 %v578, 0.3275911
        %v595 = vmul.f32 %v579, 0.3275911
        %v596 = vmul.f32 %v580, 0.3275911
        %v597 = vmul.f32 %v581, 0.3275911
        %v598 = vmul.f32 %v582, 0.3275911
        %v599 = vmul.f32 %v583, 0.3275911
        %v600 = vadd.f32 %v584, 1.0
        %v601 = vadd.f32 %v585, 1.0
        %v602 = vadd.f32 %v586, 1.0
        %v603 = vadd.f32 %v587, 1.0
        %v604 = vadd.f32 %v588, 1.0
        %v605 = vadd.f32 %v589, 1.0
        %v606 = vadd.f32 %v590, 1.0
        %v607 = vadd.f32 %v591, 1.0
        %v608 = vadd.f32 %v592, 1.0
        %v609 = vadd.f32 %v593, 1.0
        %v610 = vadd.f32 %v594, 1.0
        %v611 = vadd.f32 %v595, 1.0
        %v612 = vadd.f32 %v596, 1.0
        %v613 = vadd.f32 %v597, 1.0
        %v614 = vadd.f32 %v598, 1.0
        %v615 = vadd.f32 %v599, 1.0
        %v616 = vrcp.pop %v600
        %v617 = vmul.f32 1.0, %v616
        %v618 = vrcp.pop %v601
        %v619 = vmul.f32 1.0, %v618
        %v620 = vrcp.pop %v602
        %v621 = vmul.f32 1.0, %v620
        %v622 = vrcp.pop %v603
        %v623 = vmul.f32 1.0, %v622
        %v624 = vrcp.pop %v604
        %v625 = vmul.f32 1.0, %v624
        %v626 = vrcp.pop %v605
        %v627 = vmul.f32 1.0, %v626
        %v628 = vrcp.pop %v606
        %v629 = vmul.f32 1.0, %v628
        %v630 = vrcp.pop %v607
        %v631 = vmul.f32 1.0, %v630
        %v632 = vrcp.pop %v608
        %v633 = vmul.f32 1.0, %v632
        %v634 = vrcp.pop %v609
        %v635 = vmul.f32 1.0, %v634
        %v636 = vrcp.pop %v610
        %v637 = vmul.f32 1.0, %v636
        %v638 = vrcp.pop %v611
        %v639 = vmul.f32 1.0, %v638
        %v640 = vrcp.pop %v612
        %v641 = vmul.f32 1.0, %v640
        %v642 = vrcp.pop %v613
        %v643 = vmul.f32 1.0, %v642
        %v644 = vrcp.pop %v614
        %v645 = vmul.f32 1.0, %v644
        %v646 = vrcp.pop %v615
        %v647 = vmul.f32 1.0, %v646
        %v648 = vmul.f32 %v617, 1.0614054
        %v649 = vmul.f32 %v619, 1.0614054
        %v650 = vmul.f32 %v621, 1.0614054
        %v651 = vmul.f32 %v623, 1.0614054
        %v652 = vmul.f32 %v625, 1.0614054
        %v653 = vmul.f32 %v627, 1.0614054
        %v654 = vmul.f32 %v629, 1.0614054
        %v655 = vmul.f32 %v631, 1.0614054
        %v656 = vmul.f32 %v633, 1.0614054
        %v657 = vmul.f32 %v635, 1.0614054
        %v658 = vmul.f32 %v637, 1.0614054
        %v659 = vmul.f32 %v639, 1.0614054
        %v660 = vmul.f32 %v641, 1.0614054
        %v661 = vmul.f32 %v643, 1.0614054
        %v662 = vmul.f32 %v645, 1.0614054
        %v663 = vmul.f32 %v647, 1.0614054
        %v664 = vadd.f32 %v648, -1.4531521
        %v665 = vadd.f32 %v649, -1.4531521
        %v666 = vadd.f32 %v650, -1.4531521
        %v667 = vadd.f32 %v651, -1.4531521
        %v668 = vadd.f32 %v652, -1.4531521
        %v669 = vadd.f32 %v653, -1.4531521
        %v670 = vadd.f32 %v654, -1.4531521
        %v671 = vadd.f32 %v655, -1.4531521
        %v672 = vadd.f32 %v656, -1.4531521
        %v673 = vadd.f32 %v657, -1.4531521
        %v674 = vadd.f32 %v658, -1.4531521
        %v675 = vadd.f32 %v659, -1.4531521
        %v676 = vadd.f32 %v660, -1.4531521
        %v677 = vadd.f32 %v661, -1.4531521
        %v678 = vadd.f32 %v662, -1.4531521
        %v679 = vadd.f32 %v663, -1.4531521
        %v680 = vmul.f32 %v664, %v617
        %v681 = vmul.f32 %v665, %v619
        %v682 = vmul.f32 %v666, %v621
        %v683 = vmul.f32 %v667, %v623
        %v684 = vmul.f32 %v668, %v625
        %v685 = vmul.f32 %v669, %v627
        %v686 = vmul.f32 %v670, %v629
        %v687 = vmul.f32 %v671, %v631
        %v688 = vmul.f32 %v672, %v633
        %v689 = vmul.f32 %v673, %v635
        %v690 = vmul.f32 %v674, %v637
        %v691 = vmul.f32 %v675, %v639
        %v692 = vmul.f32 %v676, %v641
        %v693 = vmul.f32 %v677, %v643
        %v694 = vmul.f32 %v678, %v645
        %v695 = vmul.f32 %v679, %v647
        %v696 = vadd.f32 %v680, 1.4214138
        %v697 = vadd.f32 %v681, 1.4214138
        %v698 = vadd.f32 %v682, 1.4214138
        %v699 = vadd.f32 %v683, 1.4214138
        %v700 = vadd.f32 %v684, 1.4214138
        %v701 = vadd.f32 %v685, 1.4214138
        %v702 = vadd.f32 %v686, 1.4214138
        %v703 = vadd.f32 %v687, 1.4214138
        %v704 = vadd.f32 %v688, 1.4214138
        %v705 = vadd.f32 %v689, 1.4214138
        %v706 = vadd.f32 %v690, 1.4214138
        %v707 = vadd.f32 %v691, 1.4214138
        %v708 = vadd.f32 %v692, 1.4214138
        %v709 = vadd.f32 %v693, 1.4214138
        %v710 = vadd.f32 %v694, 1.4214138
        %v711 = vadd.f32 %v695, 1.4214138
        %v712 = vmul.f32 %v696, %v617
        %v713 = vmul.f32 %v697, %v619
        %v714 = vmul.f32 %v698, %v621
        %v715 = vmul.f32 %v699, %v623
        %v716 = vmul.f32 %v700, %v625
        %v717 = vmul.f32 %v701, %v627
        %v718 = vmul.f32 %v702, %v629
        %v719 = vmul.f32 %v703, %v631
        %v720 = vmul.f32 %v704, %v633
        %v721 = vmul.f32 %v705, %v635
        %v722 = vmul.f32 %v706, %v637
        %v723 = vmul.f32 %v707, %v639
        %v724 = vmul.f32 %v708, %v641
        %v725 = vmul.f32 %v709, %v643
        %v726 = vmul.f32 %v710, %v645
        %v727 = vmul.f32 %v711, %v647
        %v728 = vadd.f32 %v712, -0.28449672
        %v729 = vadd.f32 %v713, -0.28449672
        %v730 = vadd.f32 %v714, -0.28449672
        %v731 = vadd.f32 %v715, -0.28449672
        %v732 = vadd.f32 %v716, -0.28449672
        %v733 = vadd.f32 %v717, -0.28449672
        %v734 = vadd.f32 %v718, -0.28449672
        %v735 = vadd.f32 %v719, -0.28449672
        %v736 = vadd.f32 %v720, -0.28449672
        %v737 = vadd.f32 %v721, -0.28449672
        %v738 = vadd.f32 %v722, -0.28449672
        %v739 = vadd.f32 %v723, -0.28449672
        %v740 = vadd.f32 %v724, -0.28449672
        %v741 = vadd.f32 %v725, -0.28449672
        %v742 = vadd.f32 %v726, -0.28449672
        %v743 = vadd.f32 %v727, -0.28449672
        %v744 = vmul.f32 %v728, %v617
        %v745 = vmul.f32 %v729, %v619
        %v746 = vmul.f32 %v730, %v621
        %v747 = vmul.f32 %v731, %v623
        %v748 = vmul.f32 %v732, %v625
        %v749 = vmul.f32 %v733, %v627
        %v750 = vmul.f32 %v734, %v629
        %v751 = vmul.f32 %v735, %v631
        %v752 = vmul.f32 %v736, %v633
        %v753 = vmul.f32 %v737, %v635
        %v754 = vmul.f32 %v738, %v637
        %v755 = vmul.f32 %v739, %v639
        %v756 = vmul.f32 %v740, %v641
        %v757 = vmul.f32 %v741, %v643
        %v758 = vmul.f32 %v742, %v645
        %v759 = vmul.f32 %v743, %v647
        %v760 = vadd.f32 %v744, 0.2548296
        %v761 = vadd.f32 %v745, 0.2548296
        %v762 = vadd.f32 %v746, 0.2548296
        %v763 = vadd.f32 %v747, 0.2548296
        %v764 = vadd.f32 %v748, 0.2548296
        %v765 = vadd.f32 %v749, 0.2548296
        %v766 = vadd.f32 %v750, 0.2548296
        %v767 = vadd.f32 %v751, 0.2548296
        %v768 = vadd.f32 %v752, 0.2548296
        %v769 = vadd.f32 %v753, 0.2548296
        %v770 = vadd.f32 %v754, 0.2548296
        %v771 = vadd.f32 %v755, 0.2548296
        %v772 = vadd.f32 %v756, 0.2548296
        %v773 = vadd.f32 %v757, 0.2548296
        %v774 = vadd.f32 %v758, 0.2548296
        %v775 = vadd.f32 %v759, 0.2548296
        %v776 = vmul.f32 %v760, %v617
        %v777 = vmul.f32 %v761, %v619
        %v778 = vmul.f32 %v762, %v621
        %v779 = vmul.f32 %v763, %v623
        %v780 = vmul.f32 %v764, %v625
        %v781 = vmul.f32 %v765, %v627
        %v782 = vmul.f32 %v766, %v629
        %v783 = vmul.f32 %v767, %v631
        %v784 = vmul.f32 %v768, %v633
        %v785 = vmul.f32 %v769, %v635
        %v786 = vmul.f32 %v770, %v637
        %v787 = vmul.f32 %v771, %v639
        %v788 = vmul.f32 %v772, %v641
        %v789 = vmul.f32 %v773, %v643
        %v790 = vmul.f32 %v774, %v645
        %v791 = vmul.f32 %v775, %v647
        %v792 = vsub.f32 0.0, %v568
        %v793 = vsub.f32 0.0, %v569
        %v794 = vsub.f32 0.0, %v570
        %v795 = vsub.f32 0.0, %v571
        %v796 = vsub.f32 0.0, %v572
        %v797 = vsub.f32 0.0, %v573
        %v798 = vsub.f32 0.0, %v574
        %v799 = vsub.f32 0.0, %v575
        %v800 = vsub.f32 0.0, %v576
        %v801 = vsub.f32 0.0, %v577
        %v802 = vsub.f32 0.0, %v578
        %v803 = vsub.f32 0.0, %v579
        %v804 = vsub.f32 0.0, %v580
        %v805 = vsub.f32 0.0, %v581
        %v806 = vsub.f32 0.0, %v582
        %v807 = vsub.f32 0.0, %v583
        %v808 = vmul.f32 %v792, %v568
        %v809 = vmul.f32 %v793, %v569
        %v810 = vmul.f32 %v794, %v570
        %v811 = vmul.f32 %v795, %v571
        %v812 = vmul.f32 %v796, %v572
        %v813 = vmul.f32 %v797, %v573
        %v814 = vmul.f32 %v798, %v574
        %v815 = vmul.f32 %v799, %v575
        %v816 = vmul.f32 %v800, %v576
        %v817 = vmul.f32 %v801, %v577
        %v818 = vmul.f32 %v802, %v578
        %v819 = vmul.f32 %v803, %v579
        %v820 = vmul.f32 %v804, %v580
        %v821 = vmul.f32 %v805, %v581
        %v822 = vmul.f32 %v806, %v582
        %v823 = vmul.f32 %v807, %v583
        %v824 = vmul.f32 %v808, 1.442695
        %v825 = vpow.pop %v824
        %v826 = vmul.f32 %v809, 1.442695
        %v827 = vpow.pop %v826
        %v828 = vmul.f32 %v810, 1.442695
        %v829 = vpow.pop %v828
        %v830 = vmul.f32 %v811, 1.442695
        %v831 = vpow.pop %v830
        %v832 = vmul.f32 %v812, 1.442695
        %v833 = vpow.pop %v832
        %v834 = vmul.f32 %v813, 1.442695
        %v835 = vpow.pop %v834
        %v836 = vmul.f32 %v814, 1.442695
        %v837 = vpow.pop %v836
        %v838 = vmul.f32 %v815, 1.442695
        %v839 = vpow.pop %v838
        %v840 = vmul.f32 %v816, 1.442695
        %v841 = vpow.pop %v840
        %v842 = vmul.f32 %v817, 1.442695
        %v843 = vpow.pop %v842
        %v844 = vmul.f32 %v818, 1.442695
        %v845 = vpow.pop %v844
        %v846 = vmul.f32 %v819, 1.442695
        %v847 = vpow.pop %v846
        %v848 = vmul.f32 %v820, 1.442695
        %v849 = vpow.pop %v848
        %v850 = vmul.f32 %v821, 1.442695
        %v851 = vpow.pop %v850
        %v852 = vmul.f32 %v822, 1.442695
        %v853 = vpow.pop %v852
        %v854 = vmul.f32 %v823, 1.442695
        %v855 = vpow.pop %v854
        %v856 = vmul.f32 %v776, %v825
        %v857 = vmul.f32 %v777, %v827
        %v858 = vmul.f32 %v778, %v829
        %v859 = vmul.f32 %v779, %v831
        %v860 = vmul.f32 %v780, %v833
        %v861 = vmul.f32 %v781, %v835
        %v862 = vmul.f32 %v782, %v837
        %v863 = vmul.f32 %v783, %v839
        %v864 = vmul.f32 %v784, %v841
        %v865 = vmul.f32 %v785, %v843
        %v866 = vmul.f32 %v786, %v845
        %v867 = vmul.f32 %v787, %v847
        %v868 = vmul.f32 %v788, %v849
        %v869 = vmul.f32 %v789, %v851
        %v870 = vmul.f32 %v790, %v853
        %v871 = vmul.f32 %v791, %v855
        %v872 = vsub.f32 1.0, %v856
        %v873 = vsub.f32 1.0, %v857
        %v874 = vsub.f32 1.0, %v858
        %v875 = vsub.f32 1.0, %v859
        %v876 = vsub.f32 1.0, %v860
        %v877 = vsub.f32 1.0, %v861
        %v878 = vsub.f32 1.0, %v862
        %v879 = vsub.f32 1.0, %v863
        %v880 = vsub.f32 1.0, %v864
        %v881 = vsub.f32 1.0, %v865
        %v882 = vsub.f32 1.0, %v866
        %v883 = vsub.f32 1.0, %v867
        %v884 = vsub.f32 1.0, %v868
        %v885 = vsub.f32 1.0, %v869
        %v886 = vsub.f32 1.0, %v870
        %v887 = vsub.f32 1.0, %v871
        %vm888 = vcmp.ge.f32.partialorder %v552, 0.0
        %vm889 = vcmp.ge.f32.partialorder %v553, 0.0
        %vm890 = vcmp.ge.f32.partialorder %v554, 0.0
        %vm891 = vcmp.ge.f32.partialorder %v555, 0.0
        %vm892 = vcmp.ge.f32.partialorder %v556, 0.0
        %vm893 = vcmp.ge.f32.partialorder %v557, 0.0
        %vm894 = vcmp.ge.f32.partialorder %v558, 0.0
        %vm895 = vcmp.ge.f32.partialorder %v559, 0.0
        %vm896 = vcmp.ge.f32.partialorder %v560, 0.0
        %vm897 = vcmp.ge.f32.partialorder %v561, 0.0
        %vm898 = vcmp.ge.f32.partialorder %v562, 0.0
        %vm899 = vcmp.ge.f32.partialorder %v563, 0.0
        %vm900 = vcmp.ge.f32.partialorder %v564, 0.0
        %vm901 = vcmp.ge.f32.partialorder %v565, 0.0
        %vm902 = vcmp.ge.f32.partialorder %v566, 0.0
        %vm903 = vcmp.ge.f32.partialorder %v567, 0.0
        %v904 = vsub.f32 0.0, %v872
        %v905 = vsub.f32 0.0, %v873
        %v906 = vsub.f32 0.0, %v874
        %v907 = vsub.f32 0.0, %v875
        %v908 = vsub.f32 0.0, %v876
        %v909 = vsub.f32 0.0, %v877
        %v910 = vsub.f32 0.0, %v878
        %v911 = vsub.f32 0.0, %v879
        %v912 = vsub.f32 0.0, %v880
        %v913 = vsub.f32 0.0, %v881
        %v914 = vsub.f32 0.0, %v882
        %v915 = vsub.f32 0.0, %v883
        %v916 = vsub.f32 0.0, %v884
        %v917 = vsub.f32 0.0, %v885
        %v918 = vsub.f32 0.0, %v886
        %v919 = vsub.f32 0.0, %v887
        %v920 = vsel %vm888, %v872, %v904
        %v921 = vsel %vm889, %v873, %v905
        %v922 = vsel %vm890, %v874, %v906
        %v923 = vsel %vm891, %v875, %v907
        %v924 = vsel %vm892, %v876, %v908
        %v925 = vsel %vm893, %v877, %v909
        %v926 = vsel %vm894, %v878, %v910
        %v927 = vsel %vm895, %v879, %v911
        %v928 = vsel %vm896, %v880, %v912
        %v929 = vsel %vm897, %v881, %v913
        %v930 = vsel %vm898, %v882, %v914
        %v931 = vsel %vm899, %v883, %v915
        %v932 = vsel %vm900, %v884, %v916
        %v933 = vsel %vm901, %v885, %v917
        %v934 = vsel %vm902, %v886, %v918
        %v935 = vsel %vm903, %v887, %v919
        %v936 = vadd.f32 %v920, 1.0
        %v937 = vadd.f32 %v921, 1.0
        %v938 = vadd.f32 %v922, 1.0
        %v939 = vadd.f32 %v923, 1.0
        %v940 = vadd.f32 %v924, 1.0
        %v941 = vadd.f32 %v925, 1.0
        %v942 = vadd.f32 %v926, 1.0
        %v943 = vadd.f32 %v927, 1.0
        %v944 = vadd.f32 %v928, 1.0
        %v945 = vadd.f32 %v929, 1.0
        %v946 = vadd.f32 %v930, 1.0
        %v947 = vadd.f32 %v931, 1.0
        %v948 = vadd.f32 %v932, 1.0
        %v949 = vadd.f32 %v933, 1.0
        %v950 = vadd.f32 %v934, 1.0
        %v951 = vadd.f32 %v935, 1.0
        %v952 = vmul.f32 %v536, %v936
        %v953 = vmul.f32 %v537, %v937
        %v954 = vmul.f32 %v538, %v938
        %v955 = vmul.f32 %v539, %v939
        %v956 = vmul.f32 %v540, %v940
        %v957 = vmul.f32 %v541, %v941
        %v958 = vmul.f32 %v542, %v942
        %v959 = vmul.f32 %v543, %v943
        %v960 = vmul.f32 %v544, %v944
        %v961 = vmul.f32 %v545, %v945
        %v962 = vmul.f32 %v546, %v946
        %v963 = vmul.f32 %v547, %v947
        %v964 = vmul.f32 %v548, %v948
        %v965 = vmul.f32 %v549, %v949
        %v966 = vmul.f32 %v550, %v950
        %v967 = vmul.f32 %v551, %v951
        %v968 = vpack.c.bf16 %v953, %v952
        %v969 = vpack.c.bf16 %v955, %v954
        %v970 = vpack.c.bf16 %v957, %v956
        %v971 = vpack.c.bf16 %v959, %v958
        %v972 = vpack.c.bf16 %v961, %v960
        %v973 = vpack.c.bf16 %v963, %v962
        %v974 = vpack.c.bf16 %v965, %v964
        %v975 = vpack.c.bf16 %v967, %v966
        %v976 = vld [vmem:[%s3] sm:$0xff]
        %v977 = vld [vmem:[%s3 + $0x8] sm:$0xff]
        %v978 = vld [vmem:[%s3 + $0x10] sm:$0xff]
        %v979 = vld [vmem:[%s3 + $0x18] sm:$0xff]
        %v980 = vld [vmem:[%s3 + $0x20] sm:$0xff]
        %v981 = vld [vmem:[%s3 + $0x28] sm:$0xff]
        %v982 = vld [vmem:[%s3 + $0x30] sm:$0xff]
        %v983 = vld [vmem:[%s3 + $0x38] sm:$0xff]
        %v984 = vld [vmem:[%s3 + $0x40] sm:$0xff]
        %v985 = vld [vmem:[%s3 + $0x48] sm:$0xff]
        %v986 = vld [vmem:[%s3 + $0x50] sm:$0xff]
        %v987 = vld [vmem:[%s3 + $0x58] sm:$0xff]
        %v988 = vld [vmem:[%s3 + $0x60] sm:$0xff]
        %v989 = vld [vmem:[%s3 + $0x68] sm:$0xff]
        %v990 = vld [vmem:[%s3 + $0x70] sm:$0xff]
        %v991 = vld [vmem:[%s3 + $0x78] sm:$0xff]
        %v992 = vld [vmem:[%s4] sm:$0x3]
        %v994 = vlaneseq
        %v995 = vshrl.u32 %v994, 7
        %v996 = vsub.s32 0, %v995
        %v997 = vrot.slane %v992, %v996
        %v998 = vlaneseq
        %v999 = vshrl.u32 %v998, 7
        %v1000 = vsub.s32 1, %v999
        %v1001 = vrot.slane %v992, %v1000
        %v1020 = vunpack.c.l.b16 %v976
        %v1021 = vunpack.c.h.b16 %v976
        %v1022 = vunpack.c.l.b16 %v977
        %v1023 = vunpack.c.h.b16 %v977
        %v1024 = vunpack.c.l.b16 %v978
        %v1025 = vunpack.c.h.b16 %v978
        %v1026 = vunpack.c.l.b16 %v979
        %v1027 = vunpack.c.h.b16 %v979
        %v1028 = vunpack.c.l.b16 %v980
        %v1029 = vunpack.c.h.b16 %v980
        %v1030 = vunpack.c.l.b16 %v981
        %v1031 = vunpack.c.h.b16 %v981
        %v1032 = vunpack.c.l.b16 %v982
        %v1033 = vunpack.c.h.b16 %v982
        %v1034 = vunpack.c.l.b16 %v983
        %v1035 = vunpack.c.h.b16 %v983
        %v1036 = vunpack.c.l.b16 %v984
        %v1037 = vunpack.c.h.b16 %v984
        %v1038 = vunpack.c.l.b16 %v985
        %v1039 = vunpack.c.h.b16 %v985
        %v1040 = vunpack.c.l.b16 %v986
        %v1041 = vunpack.c.h.b16 %v986
        %v1042 = vunpack.c.l.b16 %v987
        %v1043 = vunpack.c.h.b16 %v987
        %v1044 = vunpack.c.l.b16 %v988
        %v1045 = vunpack.c.h.b16 %v988
        %v1046 = vunpack.c.l.b16 %v989
        %v1047 = vunpack.c.h.b16 %v989
        %v1048 = vunpack.c.l.b16 %v990
        %v1049 = vunpack.c.h.b16 %v990
        %v1050 = vunpack.c.l.b16 %v991
        %v1051 = vunpack.c.h.b16 %v991
        %v1052 = vpack.c.b16 %v1022, %v1020
        %v1053 = vpack.c.b16 %v1023, %v1021
        %v1054 = vpack.c.b16 %v1026, %v1024
        %v1055 = vpack.c.b16 %v1027, %v1025
        %v1056 = vpack.c.b16 %v1030, %v1028
        %v1057 = vpack.c.b16 %v1031, %v1029
        %v1058 = vpack.c.b16 %v1034, %v1032
        %v1059 = vpack.c.b16 %v1035, %v1033
        %v1060 = vpack.c.b16 %v1038, %v1036
        %v1061 = vpack.c.b16 %v1039, %v1037
        %v1062 = vpack.c.b16 %v1042, %v1040
        %v1063 = vpack.c.b16 %v1043, %v1041
        %v1064 = vpack.c.b16 %v1046, %v1044
        %v1065 = vpack.c.b16 %v1047, %v1045
        %v1066 = vpack.c.b16 %v1050, %v1048
        %v1067 = vpack.c.b16 %v1051, %v1049
        %1084 = vmatprep.subr.bf16.mxu0 %v1067
        %1085 = vmatpush1.bf16.msra.mxu0 %v1066
        %1086 = vmatprep.subr.bf16.mxu0 %v1065
        %1087 = vmatpush1.bf16.msra.mxu0 %v1064
        %1088 = vmatprep.subr.bf16.mxu0 %v1063
        %1089 = vmatpush1.bf16.msra.mxu0 %v1062
        %1090 = vmatprep.subr.bf16.mxu0 %v1061
        %1091 = vmatpush1.bf16.msra.mxu0 %v1060
        %1092 = vmatprep.subr.bf16.mxu0 %v1059
        %1093 = vmatpush1.bf16.msra.mxu0 %v1058
        %1094 = vmatprep.subr.bf16.mxu0 %v1057
        %1095 = vmatpush1.bf16.msra.mxu0 %v1056
        %1096 = vmatprep.subr.bf16.mxu0 %v1055
        %1097 = vmatpush1.bf16.msra.mxu0 %v1054
        %1098 = vmatprep.subr.bf16.mxu0 %v1053
        %1099 = vmatpush1.bf16.msra.mxu0 %v1052
        %1100 = vmatprep.subr.bf16.mxu0 0
        %1101 = vmatpush2.bf16.msra.mxu0 0
        %1102 = vmatprep.subr.bf16.mxu0 0
        %1103 = vmatpush2.bf16.msra.mxu0 0
        %1104 = vmatprep.subr.bf16.mxu0 0
        %1105 = vmatpush2.bf16.msra.mxu0 0
        %1106 = vmatprep.subr.bf16.mxu0 0
        %1107 = vmatpush2.bf16.msra.mxu0 0
        %1108 = vmatprep.subr.bf16.mxu0 0
        %1109 = vmatpush2.bf16.msra.mxu0 0
        %1110 = vmatprep.subr.bf16.mxu0 0
        %1111 = vmatpush2.bf16.msra.mxu0 0
        %1112 = vmatprep.subr.bf16.mxu0 0
        %1113 = vmatpush2.bf16.msra.mxu0 0
        %1114 = vmatprep.subr.bf16.mxu0 0
        %1115 = vmatpush2.bf16.msra.mxu0 0
        %1116 = vmatprep.mubr.bf16.mxu0 0
        %1117 = vmatmul.mubr.bf16.gmra.mxu0 %v968
        %v1118 = vpop.f32.mrf.mxu0
        %v1119 = vadd.f32 %v997, %v1118
        %v1120 = vpop.f32.mrf.mxu0
        %v1121 = vadd.f32 %v1001, %v1120
        %v1122 = vpop.f32.mrf.mxu0
        %v1123 = vadd.f32 %v997, %v1122
        %v1124 = vpop.f32.mrf.mxu0
        %v1125 = vadd.f32 %v1001, %v1124
        %1126 = vmatprep.mubr.bf16.mxu0 0
        %1127 = vmatmul.mubr.bf16.gmra.mxu0 %v969
        %v1128 = vpop.f32.mrf.mxu0
        %v1129 = vadd.f32 %v997, %v1128
        %v1130 = vpop.f32.mrf.mxu0
        %v1131 = vadd.f32 %v1001, %v1130
        %v1132 = vpop.f32.mrf.mxu0
        %v1133 = vadd.f32 %v997, %v1132
        %v1134 = vpop.f32.mrf.mxu0
        %v1135 = vadd.f32 %v1001, %v1134
        %1136 = vmatprep.mubr.bf16.mxu0 0
        %1137 = vmatmul.mubr.bf16.gmra.mxu0 %v970
        %v1138 = vpop.f32.mrf.mxu0
        %v1139 = vadd.f32 %v997, %v1138
        %v1140 = vpop.f32.mrf.mxu0
        %v1141 = vadd.f32 %v1001, %v1140
        %v1142 = vpop.f32.mrf.mxu0
        %v1143 = vadd.f32 %v997, %v1142
        %v1144 = vpop.f32.mrf.mxu0
        %v1145 = vadd.f32 %v1001, %v1144
        %1146 = vmatprep.mubr.bf16.mxu0 0
        %1147 = vmatmul.mubr.bf16.gmra.mxu0 %v971
        %v1148 = vpop.f32.mrf.mxu0
        %v1149 = vadd.f32 %v997, %v1148
        %v1150 = vpop.f32.mrf.mxu0
        %v1151 = vadd.f32 %v1001, %v1150
        %v1152 = vpop.f32.mrf.mxu0
        %v1153 = vadd.f32 %v997, %v1152
        %v1154 = vpop.f32.mrf.mxu0
        %v1155 = vadd.f32 %v1001, %v1154
        %1156 = vmatprep.mubr.bf16.mxu0 0
        %1157 = vmatmul.mubr.bf16.gmra.mxu0 %v972
        %v1158 = vpop.f32.mrf.mxu0
        %v1159 = vadd.f32 %v997, %v1158
        %v1160 = vpop.f32.mrf.mxu0
        %v1161 = vadd.f32 %v1001, %v1160
        %v1162 = vpop.f32.mrf.mxu0
        %v1163 = vadd.f32 %v997, %v1162
        %v1164 = vpop.f32.mrf.mxu0
        %v1165 = vadd.f32 %v1001, %v1164
        %1166 = vmatprep.mubr.bf16.mxu0 0
        %1167 = vmatmul.mubr.bf16.gmra.mxu0 %v973
        %v1168 = vpop.f32.mrf.mxu0
        %v1169 = vadd.f32 %v997, %v1168
        %v1170 = vpop.f32.mrf.mxu0
        %v1171 = vadd.f32 %v1001, %v1170
        %v1172 = vpop.f32.mrf.mxu0
        %v1173 = vadd.f32 %v997, %v1172
        %v1174 = vpop.f32.mrf.mxu0
        %v1175 = vadd.f32 %v1001, %v1174
        %1176 = vmatprep.mubr.bf16.mxu0 0
        %1177 = vmatmul.mubr.bf16.gmra.mxu0 %v974
        %v1178 = vpop.f32.mrf.mxu0
        %v1179 = vadd.f32 %v997, %v1178
        %v1180 = vpop.f32.mrf.mxu0
        %v1181 = vadd.f32 %v1001, %v1180
        %v1182 = vpop.f32.mrf.mxu0
        %v1183 = vadd.f32 %v997, %v1182
        %v1184 = vpop.f32.mrf.mxu0
        %v1185 = vadd.f32 %v1001, %v1184
        %1186 = vmatprep.mubr.bf16.mxu0 0
        %1187 = vmatmul.mubr.bf16.gmra.mxu0 %v975
        %v1188 = vpop.f32.mrf.mxu0
        %v1189 = vadd.f32 %v997, %v1188
        %v1190 = vpop.f32.mrf.mxu0
        %v1191 = vadd.f32 %v1001, %v1190
        %v1192 = vpop.f32.mrf.mxu0
        %v1193 = vadd.f32 %v997, %v1192
        %v1194 = vpop.f32.mrf.mxu0
        %v1195 = vadd.f32 %v1001, %v1194
        %1196 = vdwg.mxu0
        %v1197 = vadd.f32 %v256, %v1119
        %v1198 = vadd.f32 %v257, %v1121
        %v1199 = vadd.f32 %v258, %v1123
        %v1200 = vadd.f32 %v259, %v1125
        %v1201 = vadd.f32 %v260, %v1129
        %v1202 = vadd.f32 %v261, %v1131
        %v1203 = vadd.f32 %v262, %v1133
        %v1204 = vadd.f32 %v263, %v1135
        %v1205 = vadd.f32 %v264, %v1139
        %v1206 = vadd.f32 %v265, %v1141
        %v1207 = vadd.f32 %v266, %v1143
        %v1208 = vadd.f32 %v267, %v1145
        %v1209 = vadd.f32 %v268, %v1149
        %v1210 = vadd.f32 %v269, %v1151
        %v1211 = vadd.f32 %v270, %v1153
        %v1212 = vadd.f32 %v271, %v1155
        %v1213 = vadd.f32 %v272, %v1159
        %v1214 = vadd.f32 %v273, %v1161
        %v1215 = vadd.f32 %v274, %v1163
        %v1216 = vadd.f32 %v275, %v1165
        %v1217 = vadd.f32 %v276, %v1169
        %v1218 = vadd.f32 %v277, %v1171
        %v1219 = vadd.f32 %v278, %v1173
        %v1220 = vadd.f32 %v279, %v1175
        %v1221 = vadd.f32 %v280, %v1179
        %v1222 = vadd.f32 %v281, %v1181
        %v1223 = vadd.f32 %v282, %v1183
        %v1224 = vadd.f32 %v283, %v1185
        %v1225 = vadd.f32 %v284, %v1189
        %v1226 = vadd.f32 %v285, %v1191
        %v1227 = vadd.f32 %v286, %v1193
        %v1228 = vadd.f32 %v287, %v1195
        %1229 = vst [vmem:[%s231] sm:$0xff] %v1197
        %1230 = vst [vmem:[%s231 + $0x8] sm:$0xff] %v1198
        %1231 = vst [vmem:[%s231 + $0x10] sm:$0xff] %v1199
        %1232 = vst [vmem:[%s231 + $0x18] sm:$0xff] %v1200
        %1233 = vst [vmem:[%s231 + $0x20] sm:$0xff] %v1201
        %1234 = vst [vmem:[%s231 + $0x28] sm:$0xff] %v1202
        %1235 = vst [vmem:[%s231 + $0x30] sm:$0xff] %v1203
        %1236 = vst [vmem:[%s231 + $0x38] sm:$0xff] %v1204
        %1237 = vst [vmem:[%s231 + $0x40] sm:$0xff] %v1205
        %1238 = vst [vmem:[%s231 + $0x48] sm:$0xff] %v1206
        %1239 = vst [vmem:[%s231 + $0x50] sm:$0xff] %v1207
        %1240 = vst [vmem:[%s231 + $0x58] sm:$0xff] %v1208
        %1241 = vst [vmem:[%s231 + $0x60] sm:$0xff] %v1209
        %1242 = vst [vmem:[%s231 + $0x68] sm:$0xff] %v1210
        %1243 = vst [vmem:[%s231 + $0x70] sm:$0xff] %v1211
        %1244 = vst [vmem:[%s231 + $0x78] sm:$0xff] %v1212
        %1245 = vst [vmem:[%s231 + $0x80] sm:$0xff] %v1213
        %1246 = vst [vmem:[%s231 + $0x88] sm:$0xff] %v1214
        %1247 = vst [vmem:[%s231 + $0x90] sm:$0xff] %v1215
        %1248 = vst [vmem:[%s231 + $0x98] sm:$0xff] %v1216
        %1249 = vst [vmem:[%s231 + $0xa0] sm:$0xff] %v1217
        %1250 = vst [vmem:[%s231 + $0xa8] sm:$0xff] %v1218
        %1251 = vst [vmem:[%s231 + $0xb0] sm:$0xff] %v1219
        %1252 = vst [vmem:[%s231 + $0xb8] sm:$0xff] %v1220
        %1253 = vst [vmem:[%s231 + $0xc0] sm:$0xff] %v1221
        %1254 = vst [vmem:[%s231 + $0xc8] sm:$0xff] %v1222
        %1255 = vst [vmem:[%s231 + $0xd0] sm:$0xff] %v1223
        %1256 = vst [vmem:[%s231 + $0xd8] sm:$0xff] %v1224
        %1257 = vst [vmem:[%s231 + $0xe0] sm:$0xff] %v1225
        %1258 = vst [vmem:[%s231 + $0xe8] sm:$0xff] %v1226
        %1259 = vst [vmem:[%s231 + $0xf0] sm:$0xff] %v1227
        %1260 = vst [vmem:[%s231 + $0xf8] sm:$0xff] %v1228
        %s1261 = sand.u32 %s134, 1
        %s1262 = sand.u32 %s134, 1
        %s1263 = smul.addr %s1262, 256
        %s1264 = scalar_lea.vmem [#allocation2], %s1263
        // Predicated region
        $region41: #{adapter_with_parameter_gen.1} parent=39 // pred_check
          %p1265 = pneg %p144
        $region42: #{adapter_with_parameter_gen.1} parent=39 // pred_check_branch
          %1267 = sbr.rel (%p1265) target = $region44
        $region43: #{adapter_with_parameter_gen.1} parent=39 // pred_region
          %s1268 = smul.u32 16, %s16
          %s1269 = ssub.s32 25, %s1268
          %p1270 = scmp.lt.s32.totalorder %s1269, 16
          %s1271 = scalar_select %p1270, %s1269, 16
          %s1272 = smul.u32 128, %s1271
          %s1273 = smul.u32 %s1272, 2
          %p1274 = scmp.ne.s32.totalorder 0, %s1273
          %s1275 = smul.addr %s1268, 2
          %s1276 = smul.addr %s1275, 8
          %s1277 = scalar_lea.vmem %s5, %s1276
          // Predicated region
          $region45: #{adapter_with_parameter_gen.1} parent=43 // pred_check
            %p1278 = pneg %p1274
          $region46: #{adapter_with_parameter_gen.1} parent=43 // pred_check_branch
            %1280 = sbr.rel (%p1278) target = $region48
          $region47: #{adapter_with_parameter_gen.1} parent=43 // pred_region
            // Predicated region
            $region49: #{adapter_with_parameter_gen.1} parent=47 // pred_check
              _
            $region50: #{adapter_with_parameter_gen.1} parent=47 // pred_check_branch
              %1282 = sbr.rel (0) target = $region52
            $region51: #{adapter_with_parameter_gen.1} parent=47 // pred_region
              %s1283 = sshrl.u32 %s1271, 4
              // While loop
              $region53: #{adapter_with_parameter_gen.1} parent=51 // loop_pre_header
                _
              $region54: #{adapter_with_parameter_gen.1} parent=51 // loop_header
                %s1285 = sphi 0, %s1287
                %p1286 = scmp.ge.s32.totalorder %s1285, %s1283
                %s1290 = sphi 0, %s1359
                %s1291 = sphi %s1264, %s1362
                %s1292 = sphi %s1277, %s1363
              $region55: #{adapter_with_parameter_gen.1} parent=51 // loop_header_branch
                %1289 = sbr.rel (%p1286) target = $region59
              $region56: #{adapter_with_parameter_gen.1} parent=51 // loop_body
                %v1293 = vld [vmem:[%s1291] sm:$0xff]
                %1294 = vst [vmem:[%s1292] sm:$0xff] %v1293
                %v1295 = vld [vmem:[%s1291 + $0x10] sm:$0xff]
                %1296 = vst [vmem:[%s1292 + $0x10] sm:$0xff] %v1295
                %v1297 = vld [vmem:[%s1291 + $0x20] sm:$0xff]
                %1298 = vst [vmem:[%s1292 + $0x20] sm:$0xff] %v1297
                %v1299 = vld [vmem:[%s1291 + $0x30] sm:$0xff]
                %1300 = vst [vmem:[%s1292 + $0x30] sm:$0xff] %v1299
                %v1301 = vld [vmem:[%s1291 + $0x40] sm:$0xff]
                %1302 = vst [vmem:[%s1292 + $0x40] sm:$0xff] %v1301
                %v1303 = vld [vmem:[%s1291 + $0x50] sm:$0xff]
                %1304 = vst [vmem:[%s1292 + $0x50] sm:$0xff] %v1303
                %v1305 = vld [vmem:[%s1291 + $0x60] sm:$0xff]
                %1306 = vst [vmem:[%s1292 + $0x60] sm:$0xff] %v1305
                %v1307 = vld [vmem:[%s1291 + $0x70] sm:$0xff]
                %1308 = vst [vmem:[%s1292 + $0x70] sm:$0xff] %v1307
                %v1309 = vld [vmem:[%s1291 + $0x80] sm:$0xff]
                %1310 = vst [vmem:[%s1292 + $0x80] sm:$0xff] %v1309
                %v1311 = vld [vmem:[%s1291 + $0x90] sm:$0xff]
                %1312 = vst [vmem:[%s1292 + $0x90] sm:$0xff] %v1311
                %v1313 = vld [vmem:[%s1291 + $0xa0] sm:$0xff]
                %1314 = vst [vmem:[%s1292 + $0xa0] sm:$0xff] %v1313
                %v1315 = vld [vmem:[%s1291 + $0xb0] sm:$0xff]
                %1316 = vst [vmem:[%s1292 + $0xb0] sm:$0xff] %v1315
                %v1317 = vld [vmem:[%s1291 + $0xc0] sm:$0xff]
                %1318 = vst [vmem:[%s1292 + $0xc0] sm:$0xff] %v1317
                %v1319 = vld [vmem:[%s1291 + $0xd0] sm:$0xff]
                %1320 = vst [vmem:[%s1292 + $0xd0] sm:$0xff] %v1319
                %v1321 = vld [vmem:[%s1291 + $0xe0] sm:$0xff]
                %1322 = vst [vmem:[%s1292 + $0xe0] sm:$0xff] %v1321
                %v1323 = vld [vmem:[%s1291 + $0xf0] sm:$0xff]
                %1324 = vst [vmem:[%s1292 + $0xf0] sm:$0xff] %v1323
                %v1325 = vld [vmem:[%s1291 + $0x8] sm:$0xff]
                %1326 = vst [vmem:[%s1292 + $0x8] sm:$0xff] %v1325
                %v1327 = vld [vmem:[%s1291 + $0x18] sm:$0xff]
                %1328 = vst [vmem:[%s1292 + $0x18] sm:$0xff] %v1327
                %v1329 = vld [vmem:[%s1291 + $0x28] sm:$0xff]
                %1330 = vst [vmem:[%s1292 + $0x28] sm:$0xff] %v1329
                %v1331 = vld [vmem:[%s1291 + $0x38] sm:$0xff]
                %1332 = vst [vmem:[%s1292 + $0x38] sm:$0xff] %v1331
                %v1333 = vld [vmem:[%s1291 + $0x48] sm:$0xff]
                %1334 = vst [vmem:[%s1292 + $0x48] sm:$0xff] %v1333
                %v1335 = vld [vmem:[%s1291 + $0x58] sm:$0xff]
                %1336 = vst [vmem:[%s1292 + $0x58] sm:$0xff] %v1335
                %v1337 = vld [vmem:[%s1291 + $0x68] sm:$0xff]
                %1338 = vst [vmem:[%s1292 + $0x68] sm:$0xff] %v1337
                %v1339 = vld [vmem:[%s1291 + $0x78] sm:$0xff]
                %1340 = vst [vmem:[%s1292 + $0x78] sm:$0xff] %v1339
                %v1341 = vld [vmem:[%s1291 + $0x88] sm:$0xff]
                %1342 = vst [vmem:[%s1292 + $0x88] sm:$0xff] %v1341
                %v1343 = vld [vmem:[%s1291 + $0x98] sm:$0xff]
                %1344 = vst [vmem:[%s1292 + $0x98] sm:$0xff] %v1343
                %v1345 = vld [vmem:[%s1291 + $0xa8] sm:$0xff]
                %1346 = vst [vmem:[%s1292 + $0xa8] sm:$0xff] %v1345
                %v1347 = vld [vmem:[%s1291 + $0xb8] sm:$0xff]
                %1348 = vst [vmem:[%s1292 + $0xb8] sm:$0xff] %v1347
                %v1349 = vld [vmem:[%s1291 + $0xc8] sm:$0xff]
                %1350 = vst [vmem:[%s1292 + $0xc8] sm:$0xff] %v1349
                %v1351 = vld [vmem:[%s1291 + $0xd8] sm:$0xff]
                %1352 = vst [vmem:[%s1292 + $0xd8] sm:$0xff] %v1351
                %v1353 = vld [vmem:[%s1291 + $0xe8] sm:$0xff]
                %1354 = vst [vmem:[%s1292 + $0xe8] sm:$0xff] %v1353
                %v1355 = vld [vmem:[%s1291 + $0xf8] sm:$0xff]
                %1356 = vst [vmem:[%s1292 + $0xf8] sm:$0xff] %v1355
                %s1357 = sadd.s32 1, %s1290
                %p1358 = scmp.ge.s32.totalorder %s1357, %s1283
                %s1359 = scalar_select %p1358, 0, %s1357
                %s1360 = smul.u32 %s1359, 256
                %s1361 = smul.u32 %s1359, 256
                %s1362 = scalar_lea.vmem %s1264, %s1360 [#allocation2]
                %s1363 = scalar_lea.vmem %s1277, %s1361
              $region57: #{adapter_with_parameter_gen.1} parent=51 // loop_footer
                %s1287 = sadd.s32 %s1285, 1
              $region58: #{adapter_with_parameter_gen.1} parent=51 // loop_footer_branch
                %1284 = sbr.rel target = $region54
              $region59: #{adapter_with_parameter_gen.1} parent=51 // loop_exit
                _
              %s1364 = sshrl.u32 %s1271, 4
              %s1365 = sand.u32 %s1271, 15
              %s1366 = smul.u32 %s1364, 16
              %s1367 = smul.u32 16, %s1366
              %s1368 = scalar_lea.vmem %s1264, %s1367 [#allocation2]
              %s1369 = smul.u32 16, %s1366
              %s1370 = scalar_lea.vmem %s1277, %s1369
              // While loop
              $region60: #{adapter_with_parameter_gen.1} parent=51 // loop_pre_header
                _
              $region61: #{adapter_with_parameter_gen.1} parent=51 // loop_header
                %s1372 = sphi 0, %s1374
                %p1373 = scmp.ge.s32.totalorder %s1372, %s1365
                %s1377 = sphi 0, %s1386
                %s1378 = sphi %s1368, %s1389
                %s1379 = sphi %s1370, %s1390
              $region62: #{adapter_with_parameter_gen.1} parent=51 // loop_header_branch
                %1376 = sbr.rel (%p1373) target = $region66
              $region63: #{adapter_with_parameter_gen.1} parent=51 // loop_body
                %v1380 = vld [vmem:[%s1378] sm:$0xff]
                %1381 = vst [vmem:[%s1379] sm:$0xff] %v1380
                %v1382 = vld [vmem:[%s1378 + $0x8] sm:$0xff]
                %1383 = vst [vmem:[%s1379 + $0x8] sm:$0xff] %v1382
                %s1384 = sadd.s32 1, %s1377
                %p1385 = scmp.ge.s32.totalorder %s1384, %s1365
                %s1386 = scalar_select %p1385, 0, %s1384
                %s1387 = smul.u32 %s1386, 16
                %s1388 = smul.u32 %s1386, 16
                %s1389 = scalar_lea.vmem %s1368, %s1387 [#allocation2]
                %s1390 = scalar_lea.vmem %s1370, %s1388
              $region64: #{adapter_with_parameter_gen.1} parent=51 // loop_footer
                %s1374 = sadd.s32 %s1372, 1
              $region65: #{adapter_with_parameter_gen.1} parent=51 // loop_footer_branch
                %1371 = sbr.rel target = $region61
              $region66: #{adapter_with_parameter_gen.1} parent=51 // loop_exit
                _
            $region52: #{adapter_with_parameter_gen.1} parent=47 // pred_fallthru
              _
            // Predicated region
            $region67: #{adapter_with_parameter_gen.1} parent=47 // pred_check
              _
            $region68: #{adapter_with_parameter_gen.1} parent=47 // pred_check_branch
              %1392 = sbr.rel target = $region70
            $region69: #{adapter_with_parameter_gen.1} parent=47 // pred_region
              _
            $region70: #{adapter_with_parameter_gen.1} parent=47 // pred_fallthru
              _
          $region48: #{adapter_with_parameter_gen.1} parent=43 // pred_fallthru
            _
          %1393 = vnop
        $region44: #{adapter_with_parameter_gen.1} parent=39 // pred_fallthru
          _
      $region40: #{adapter_with_parameter_gen.1} parent=5 // pred_fallthru
        _
      %p1394 = scmp.le.s32.totalorder 2, %s11
      // Predicated region
      $region71: #{adapter_with_parameter_gen.1} parent=5 // pred_check
        %p1395 = pneg %p1394
      $region72: #{adapter_with_parameter_gen.1} parent=5 // pred_check_branch
        %1397 = sbr.rel (%p1395) target = $region74
      $region73: #{adapter_with_parameter_gen.1} parent=5 // pred_region
        %s1398 = ssub.s32 %s11, 2
        // Predicated region
        $region75: #{adapter_with_parameter_gen.1} parent=73 // pred_check
          %p1399 = pneg %p150
        $region76: #{adapter_with_parameter_gen.1} parent=73 // pred_check_branch
          %1401 = sbr.rel (%p1399) target = $region78
        $region77: #{adapter_with_parameter_gen.1} parent=73 // pred_region
          %s1402 = sand.u32 %s135, 1
          %s1403 = sand.u32 %s135, 1
          %s1404 = smul.addr %s1403, 256
          %s1405 = scalar_lea.vmem [#allocation2], %s1404
        $region78: #{adapter_with_parameter_gen.1} parent=73 // pred_fallthru
          _
      $region74: #{adapter_with_parameter_gen.1} parent=5 // pred_fallthru
        _
    $region6: #{adapter_with_parameter_gen.1} parent=1 // loop_footer
      %s15 = sadd.s32 1, %s11
    $region7: #{adapter_with_parameter_gen.1} parent=1 // loop_footer_branch
      %10 = sbr.rel target = $region3
    $region8: #{adapter_with_parameter_gen.1} parent=1 // loop_exit
      _

</llo_original>
